<compile_context>
chip_gen: v6e
topology: v6e:2x2x1
jax: 0.10.0
libtpu: 0.0.40
codegen_flags: <defaults>
</compile_context>

<pallas_src>
import jax
import jax.numpy as jnp
from jax import lax
from jax.experimental import pallas as pl
from jax.experimental.pallas import tpu as pltpu


def _round_up(x, m):
    return (x + m - 1) // m * m


def lstm_encoder_kernel(x_ref, w_ih_ref, w_hh_ref, b_ref, w_out_ref, b_out_ref,
                        out_ref, seq_buf, gx_buf):
    T, Mt, H = x_ref.shape                     # time-major activation block
    L, _, G = w_ih_ref.shape                   # G == 4*H
    T_chunk = gx_buf.shape[0]
    cdt = seq_buf.dtype                        # compute dtype (f32 or bf16)

    n_full = T // T_chunk
    rem = T - n_full * T_chunk

    # Unroll heuristic: keep unrolled live gate temporaries a fraction of the
    # 64-vreg file (sweep {2,4,8} per (Mt,H) config for last few %).
    state_vregs = (-(-Mt // 8)) * (-(-G // 128))
    unroll = int(max(2, min(8, 32 // max(1, state_vregs))))

    vreg_aligned = (H % 128) == 0
    if not vreg_aligned:
        # Full-width nonlinearities when H < 128: one sigmoid + one tanh pass
        # over the lane-dense (Mt, 4H) gates instead of four 1/4-occupancy ones.
        lane = lax.broadcasted_iota(jnp.int32, (Mt, G), 1)
        g_mask = (lane >= 2 * H) & (lane < 3 * H)

    h_last = jnp.zeros((Mt, H), jnp.float32)

    for l in range(L):
        w_ih = w_ih_ref[l]                     # (H, 4H), MXU input dtype
        w_hh = w_hh_ref[l]                     # (H, 4H)
        bias = b_ref[l]                        # (1, 4H) f32  (b_ih + b_hh)
        write_seq = l < (L - 1)
        src_ref = x_ref if l == 0 else seq_buf

        def run_chunk(t0, carry, steps, *, w_ih=w_ih, w_hh=w_hh, bias=bias,
                      write_seq=write_seq, src_ref=src_ref):
            # Hoisted x-gate projection for `steps` timesteps: ONE MXU GEMM
            # instead of `steps` small ones; stored in the compute dtype.
            # TODO(synk): double-buffer gx_buf and issue chunk ci+1's GEMM
            # before consuming chunk ci to overlap MXU with the recurrence.
            src = src_ref[pl.ds(t0, steps)].reshape(steps * Mt, H)
            gx = jnp.dot(src, w_ih, preferred_element_type=jnp.float32) + bias
            gx_buf[pl.ds(0, steps)] = gx.reshape(steps, Mt, G).astype(cdt)

            def step(j, hc):
                h, c = hc                      # f32 (Mt, H), live in vregs/VMEM
                # TODO(synk): hold w_hh in MXU weight-staging registers across
                # the time loop (pltpu.matmul_push_rhs/acc_lhs/pop) to avoid
                # re-pushing the RHS on every step of the serial recurrence.
                gates = gx_buf[j].astype(jnp.float32) + jnp.dot(
                    h.astype(w_hh.dtype), w_hh,
                    preferred_element_type=jnp.float32)
                if vreg_aligned:
                    i_g = jax.nn.sigmoid(gates[:, 0 * H:1 * H])
                    f_g = jax.nn.sigmoid(gates[:, 1 * H:2 * H])
                    g_g = jnp.tanh(gates[:, 2 * H:3 * H])
                    o_g = jax.nn.sigmoid(gates[:, 3 * H:4 * H])
                else:
                    act = jnp.where(g_mask, jnp.tanh(gates),
                                    jax.nn.sigmoid(gates))
                    i_g = act[:, 0 * H:1 * H]
                    f_g = act[:, 1 * H:2 * H]
                    g_g = act[:, 2 * H:3 * H]
                    o_g = act[:, 3 * H:4 * H]
                c_new = f_g * c + i_g * g_g
                h_new = o_g * jnp.tanh(c_new)
                if write_seq:
                    seq_buf[t0 + j] = h_new.astype(cdt)   # next layer's input
                return h_new, c_new

            return lax.fori_loop(0, steps, step, carry, unroll=unroll)

        carry = (jnp.zeros((Mt, H), jnp.float32),
                 jnp.zeros((Mt, H), jnp.float32))
        if n_full == 1 and rem == 0:
            carry = run_chunk(0, carry, T_chunk)          # fully static path
        else:
            if n_full > 0:
                carry = lax.fori_loop(
                    0, n_full,
                    lambda ci, cr, rc=run_chunk: rc(ci * T_chunk, cr, T_chunk),
                    carry)
            if rem > 0:                                   # static-length tail
                carry = run_chunk(n_full * T_chunk, carry, rem)
        h_last = carry[0]

    # Output Linear(H->O_pad) + ReLU on the last layer's final hidden state.
    y = jnp.dot(h_last.astype(w_out_ref.dtype), w_out_ref[...],
                preferred_element_type=jnp.float32) + b_out_ref[...]
    out_ref[...] = jnp.maximum(y, 0.0).astype(out_ref.dtype)


def lstm_encoder(x, params, *, compute_dtype=jnp.float32, m_target=512,
                 time_chunk=16, vmem_budget_bytes=40 << 20):
    B, N, T, C = x.shape
    M = B * N
    H = params["w_in"].shape[1]
    O = params["w_out"].shape[1]
    L = params["w_ih"].shape[0]
    G = 4 * H
    cdt = jnp.dtype(compute_dtype)
    itm = cdt.itemsize

    # NOTE: params["b"] must be the PRE-SUMMED PyTorch bias (b_ih + b_hh) per layer.
    assert params["b"].shape == (L, 1, G)

    O_pad = _round_up(O, 128)
    T_chunk = max(1, min(time_chunk, T))
    seq_rows = T if L > 1 else 1

    def vmem_estimate(mt):
        return (2 * T * mt * H * itm                 # streamed activation (x2 buf)
                + 2 * mt * O_pad * itm               # output block (x2 buf)
                + 2 * (2 * L * H * G + H * O_pad) * itm + 2 * (L * G + O_pad) * 4
                + seq_rows * mt * H * itm            # seq_buf scratch
                + T_chunk * mt * G * itm)            # gx_buf scratch

    # --- M tiling: bound padding waste, keep >=2 tiles so both v7x TCs get
    # work, shrink tiles until the VMEM estimate fits the per-core budget. ---
    grid_m = max(1, -(-M // m_target))
    if M >= 16 and grid_m < 2:
        grid_m = 2
    m_tile = _round_up(-(-M // grid_m), 8)
    while m_tile > 8 and vmem_estimate(m_tile) > vmem_budget_bytes:
        grid_m += 1
        m_tile = _round_up(-(-M // grid_m), 8)
    M_pad = m_tile * grid_m

    # --- Input Linear(C->H) + ReLU in XLA: lane-dense H output, no K=4 MXU
    # pass and no lane-padded x block in VMEM. Emitted time-major directly so
    # there is no separate HBM transpose of the activation. ---
    x_tm = jnp.transpose(x.reshape(M, T, C), (1, 0, 2)).reshape(T * M, C)
    seq0 = jax.nn.relu(x_tm @ params["w_in"] + params["b_in"][0])
    seq0 = seq0.reshape(T, M, H)
    if M_pad != M:
        seq0 = jnp.pad(seq0, ((0, 0), (0, M_pad - M), (0, 0)))
    seq0 = seq0.astype(cdt)

    w_ih = params["w_ih"].astype(cdt)
    w_hh = params["w_hh"].astype(cdt)
    b = params["b"].astype(jnp.float32)
    w_out = jnp.pad(params["w_out"], ((0, 0), (0, O_pad - O))).astype(cdt)
    b_out = jnp.pad(params["b_out"], ((0, 0), (0, O_pad - O))).astype(jnp.float32)

    vmem_limit = int(min(100 << 20, max(32 << 20, vmem_estimate(m_tile) * 5 // 4)))

    out = pl.pallas_call(
        lstm_encoder_kernel,
        out_shape=jax.ShapeDtypeStruct((M_pad, O_pad), cdt),
        grid_spec=pltpu.PrefetchScalarGridSpec(
            num_scalar_prefetch=0,
            grid=(grid_m,),
            in_specs=[
                pl.BlockSpec((T, m_tile, H), lambda i: (0, i, 0)),   # activation (streamed)
                pl.BlockSpec((L, H, G), lambda i: (0, 0, 0)),        # w_ih (resident)
                pl.BlockSpec((L, H, G), lambda i: (0, 0, 0)),        # w_hh (resident)
                pl.BlockSpec((L, 1, G), lambda i: (0, 0, 0)),        # b
                pl.BlockSpec((H, O_pad), lambda i: (0, 0)),          # w_out
                pl.BlockSpec((1, O_pad), lambda i: (0, 0)),          # b_out
            ],
            out_specs=pl.BlockSpec((m_tile, O_pad), lambda i: (i, 0)),
            scratch_shapes=[
                pltpu.VMEM((seq_rows, m_tile, H), cdt),   # layer-to-layer sequence
                pltpu.VMEM((T_chunk, m_tile, G), cdt),    # chunked x-gate projections
            ],
        ),
        compiler_params=pltpu.CompilerParams(
            dimension_semantics=("parallel",),
            vmem_limit_bytes=vmem_limit),
    )(seq0, w_ih, w_hh, b, w_out, b_out)

    return out[:M, :O].astype(jnp.float32).reshape(B, N, O)


def init_params(key, in_channels, hidden_unit, output_size, num_lstm_layer):
    ks = jax.random.split(key, 8)
    s = 0.1
    return {
        "w_in":  s * jax.random.normal(ks[0], (in_channels, hidden_unit), jnp.float32),
        "b_in":  s * jax.random.normal(ks[1], (1, hidden_unit), jnp.float32),
        # all layers have input size == hidden_unit (input linear maps C->H first)
        "w_ih":  s * jax.random.normal(ks[2], (num_lstm_layer, hidden_unit, 4 * hidden_unit), jnp.float32),
        "w_hh":  s * jax.random.normal(ks[3], (num_lstm_layer, hidden_unit, 4 * hidden_unit), jnp.float32),
        "b":     s * jax.random.normal(ks[4], (num_lstm_layer, 1, 4 * hidden_unit), jnp.float32),
        "w_out": s * jax.random.normal(ks[5], (hidden_unit, output_size), jnp.float32),
        "b_out": s * jax.random.normal(ks[6], (1, output_size), jnp.float32),
    }


def reference(x, params):
    # pure-JAX reference matching PyTorch LSTMEncoder.forward
    B, N, T, C = x.shape
    M = B * N
    H = params["w_in"].shape[1]
    seq = jax.nn.relu(x.reshape(M, T, C) @ params["w_in"] + params["b_in"][0])
    L = params["w_ih"].shape[0]
    h = jnp.zeros((M, H), jnp.float32)
    for l in range(L):
        h = jnp.zeros((M, H), jnp.float32)
        c = jnp.zeros((M, H), jnp.float32)
        outs = []
        for t in range(T):
            gates = (seq[:, t] @ params["w_ih"][l]
                     + h @ params["w_hh"][l] + params["b"][l, 0])
            i = jax.nn.sigmoid(gates[:, :H])
            f = jax.nn.sigmoid(gates[:, H:2 * H])
            g = jnp.tanh(gates[:, 2 * H:3 * H])
            o = jax.nn.sigmoid(gates[:, 3 * H:])
            c = f * c + i * g
            h = o * jnp.tanh(c)
            outs.append(h)
        seq = jnp.stack(outs, axis=1)
    y = jax.nn.relu(h @ params["w_out"] + params["b_out"][0])
    return y.reshape(B, N, -1)


if __name__ == "__main__":
    B, N, T = 2, 3, 8
    in_channels, hidden_unit, output_size, num_lstm_layer = 4, 32, 16, 2

    key = jax.random.PRNGKey(0)
    kx, kp = jax.random.split(key)
    x = jax.random.normal(kx, (B, N, T, in_channels), jnp.float32)
    params = init_params(kp, in_channels, hidden_unit, output_size, num_lstm_layer)

    ref = reference(x, params)

    # f32 compute: tight numerical check against the pure-JAX reference.
    out_f32 = jax.block_until_ready(lstm_encoder(x, params, compute_dtype=jnp.float32))
    assert out_f32.shape == (B, N, output_size)
    assert jnp.allclose(out_f32, ref, rtol=1e-3, atol=1e-4)

    # Exercise the chunked + ragged-tail recurrence path (time_chunk=3 -> 2 full
    # chunks + remainder of 2) with f32 compute, still tight tolerance.
    out_chunked = jax.block_until_ready(
        lstm_encoder(x, params, compute_dtype=jnp.float32, time_chunk=3))
    assert jnp.allclose(out_chunked, ref, rtol=1e-3, atol=1e-4)

    # bf16 MXU inputs + bf16 gx/seq/output buffers (recommended on v6e/v7x):
    # f32 accumulation and f32 gate/state math, looser tolerance vs f32 ref.
    out_bf16 = jax.block_until_ready(lstm_encoder(x, params, compute_dtype=jnp.bfloat16))
    assert out_bf16.shape == (B, N, output_size)
    assert jnp.allclose(out_bf16, ref, rtol=1e-1, atol=2e-2)

    print("KERNEL_OK")
</pallas_src>

<mosaic_0001>
module attributes {stable_mosaic.version = 11 : i64} {
  func.func @lstm_encoder_kernel(%arg0: i32, %arg1: memref<8x8x32xf32, #tpu.memory_space<vmem>>, %arg2: memref<2x32x128xf32, #tpu.memory_space<vmem>>, %arg3: memref<2x32x128xf32, #tpu.memory_space<vmem>>, %arg4: memref<2x1x128xf32, #tpu.memory_space<vmem>>, %arg5: memref<32x128xf32, #tpu.memory_space<vmem>>, %arg6: memref<1x128xf32, #tpu.memory_space<vmem>>, %arg7: memref<8x128xf32, #tpu.memory_space<vmem>>, %arg8: memref<8x8x32xf32, #tpu.memory_space<vmem>>, %arg9: memref<8x8x128xf32, #tpu.memory_space<vmem>>) attributes {dimension_semantics = [#tpu.dimension_semantics<parallel>], iteration_bounds = array<i64: 1>, scalar_prefetch = 0 : i64, scratch_operands = 2 : i64, tpu.core_type = #tpu.core_type<tc>, window_params = [{transform_indices = @transform_0, window_bounds = array<i64: 8, 8, 32>}, {pipeline_mode = #tpu.pipeline_mode<synchronous>, transform_indices = @transform_1, window_bounds = array<i64: 2, 32, 128>}, {pipeline_mode = #tpu.pipeline_mode<synchronous>, transform_indices = @transform_2, window_bounds = array<i64: 2, 32, 128>}, {pipeline_mode = #tpu.pipeline_mode<synchronous>, transform_indices = @transform_3, window_bounds = array<i64: 2, 1, 128>}, {pipeline_mode = #tpu.pipeline_mode<synchronous>, transform_indices = @transform_4, window_bounds = array<i64: 32, 128>}, {pipeline_mode = #tpu.pipeline_mode<synchronous>, transform_indices = @transform_5, window_bounds = array<i64: 1, 128>}, {transform_indices = @transform_6, window_bounds = array<i64: 8, 128>}]} {
    %0 = tpu.iota {dimensions = array<i32: 1>} : vector<8x128xi32>
    %c64_i32 = arith.constant 64 : i32
    %1 = vector.broadcast %c64_i32 : i32 to vector<8x128xi32>
    %2 = arith.cmpi sge, %0, %1 : vector<8x128xi32>
    %c96_i32 = arith.constant 96 : i32
    %3 = vector.broadcast %c96_i32 : i32 to vector<8x128xi32>
    %4 = arith.cmpi slt, %0, %3 : vector<8x128xi32>
    %5 = arith.andi %2, %4 : vector<8x128xi1>
    %c0 = arith.constant 0 : index
    %c0_0 = arith.constant 0 : index
    %c0_1 = arith.constant 0 : index
    %6 = vector.load %arg2[%c0, %c0_0, %c0_1] : memref<2x32x128xf32, #tpu.memory_space<vmem>>, vector<1x32x128xf32>
    %7 = vector.shape_cast %6 : vector<1x32x128xf32> to vector<32x128xf32>
    %c0_2 = arith.constant 0 : index
    %c0_3 = arith.constant 0 : index
    %c0_4 = arith.constant 0 : index
    %8 = vector.load %arg3[%c0_2, %c0_3, %c0_4] : memref<2x32x128xf32, #tpu.memory_space<vmem>>, vector<1x32x128xf32>
    %9 = vector.shape_cast %8 : vector<1x32x128xf32> to vector<32x128xf32>
    %c0_5 = arith.constant 0 : index
    %c0_6 = arith.constant 0 : index
    %c0_7 = arith.constant 0 : index
    %10 = vector.load %arg4[%c0_5, %c0_6, %c0_7] : memref<2x1x128xf32, #tpu.memory_space<vmem>>, vector<1x1x128xf32>
    %11 = vector.shape_cast %10 : vector<1x1x128xf32> to vector<1x128xf32>
    %cst = arith.constant 0.000000e+00 : f32
    %12 = vector.broadcast %cst : f32 to vector<8x32xf32>
    %cst_8 = arith.constant 0.000000e+00 : f32
    %13 = vector.broadcast %cst_8 : f32 to vector<8x32xf32>
    %c0_9 = arith.constant 0 : index
    %c0_10 = arith.constant 0 : index
    %c0_11 = arith.constant 0 : index
    %14 = vector.load %arg1[%c0_9, %c0_10, %c0_11] : memref<8x8x32xf32, #tpu.memory_space<vmem>>, vector<8x8x32xf32>
    %15 = vector.shape_cast %14 : vector<8x8x32xf32> to vector<64x32xf32>
    %cst_12 = arith.constant dense<0.000000e+00> : vector<64x128xf32>
    %16 = tpu.matmul %15, %7, %cst_12 {dimension_numbers = #tpu.dot_dimension_numbers<[1], [0], [0], [1], [0, 0, 1, 1], [], []>} : vector<64x32xf32>, vector<32x128xf32>, vector<64x128xf32> -> vector<64x128xf32>
    %17 = vector.broadcast %11 : vector<1x128xf32> to vector<64x128xf32>
    %18 = arith.addf %16, %17 : vector<64x128xf32>
    %19 = vector.shape_cast %18 : vector<64x128xf32> to vector<8x8x128xf32>
    %c0_13 = arith.constant 0 : index
    %c0_14 = arith.constant 0 : index
    %c0_15 = arith.constant 0 : index
    %20 = vector.load %arg9[%c0_13, %c0_14, %c0_15] : memref<8x8x128xf32, #tpu.memory_space<vmem>>, vector<8x8x128xf32>
    tpu.vector_store %arg9[%c0_13, %c0_14, %c0_15], %19 {strides = array<i32>} : memref<8x8x128xf32, #tpu.memory_space<vmem>>, vector<8x8x128xf32>,
    %c0_i32 = arith.constant 0 : i32
    %21 = arith.index_cast %c0_i32 : i32 to index
    %c0_16 = arith.constant 0 : index
    %c0_17 = arith.constant 0 : index
    %22 = vector.load %arg9[%21, %c0_16, %c0_17] : memref<8x8x128xf32, #tpu.memory_space<vmem>>, vector<1x8x128xf32>
    %23 = vector.shape_cast %22 : vector<1x8x128xf32> to vector<8x128xf32>
    %cst_18 = arith.constant dense<0.000000e+00> : vector<8x128xf32>
    %24 = tpu.matmul %12, %9, %cst_18 {dimension_numbers = #tpu.dot_dimension_numbers<[1], [0], [0], [1], [0, 0, 1, 1], [], []>} : vector<8x32xf32>, vector<32x128xf32>, vector<8x128xf32> -> vector<8x128xf32>
    %25 = arith.addf %23, %24 : vector<8x128xf32>
    %26 = math.tanh %25 : vector<8x128xf32>
    %27 = arith.negf %25 : vector<8x128xf32>
    %28 = math.exp %27 : vector<8x128xf32>
    %cst_19 = arith.constant 1.000000e+00 : f32
    %29 = vector.broadcast %cst_19 : f32 to vector<8x128xf32>
    %30 = arith.addf %29, %28 : vector<8x128xf32>
    %31 = arith.divf %29, %30 : vector<8x128xf32>
    %32 = arith.select %5, %26, %31 : vector<8x128xi1>, vector<8x128xf32>
    %33 = vector.extract_strided_slice %32 {offsets = [0, 0], sizes = [8, 32], strides = [1, 1]} : vector<8x128xf32> to vector<8x32xf32>
    %34 = vector.extract_strided_slice %32 {offsets = [0, 32], sizes = [8, 32], strides = [1, 1]} : vector<8x128xf32> to vector<8x32xf32>
    %35 = vector.extract_strided_slice %32 {offsets = [0, 64], sizes = [8, 32], strides = [1, 1]} : vector<8x128xf32> to vector<8x32xf32>
    %36 = vector.extract_strided_slice %32 {offsets = [0, 96], sizes = [8, 32], strides = [1, 1]} : vector<8x128xf32> to vector<8x32xf32>
    %37 = arith.mulf %34, %13 : vector<8x32xf32>
    %38 = arith.mulf %33, %35 : vector<8x32xf32>
    %39 = arith.addf %37, %38 : vector<8x32xf32>
    %40 = math.tanh %39 : vector<8x32xf32>
    %41 = arith.mulf %36, %40 : vector<8x32xf32>
    %c0_i32_20 = arith.constant 0 : i32
    %42 = arith.addi %c0_i32_20, %c0_i32 : i32
    %43 = arith.index_cast %42 : i32 to index
    %c0_21 = arith.constant 0 : index
    %c0_22 = arith.constant 0 : index
    %44 = vector.load %arg8[%43, %c0_21, %c0_22] : memref<8x8x32xf32, #tpu.memory_space<vmem>>, vector<1x8x32xf32>
    %45 = vector.shape_cast %44 : vector<1x8x32xf32> to vector<8x32xf32>
    %46 = vector.shape_cast %41 : vector<8x32xf32> to vector<1x8x32xf32>
    tpu.vector_store %arg8[%43, %c0_21, %c0_22], %46 {strides = array<i32>} : memref<8x8x32xf32, #tpu.memory_space<vmem>>, vector<1x8x32xf32>,
    %c1_i32 = arith.constant 1 : i32
    %47 = arith.index_cast %c1_i32 : i32 to index
    %c0_23 = arith.constant 0 : index
    %c0_24 = arith.constant 0 : index
    %48 = vector.load %arg9[%47, %c0_23, %c0_24] : memref<8x8x128xf32, #tpu.memory_space<vmem>>, vector<1x8x128xf32>
    %49 = vector.shape_cast %48 : vector<1x8x128xf32> to vector<8x128xf32>
    %cst_25 = arith.constant dense<0.000000e+00> : vector<8x128xf32>
    %50 = tpu.matmul %41, %9, %cst_25 {dimension_numbers = #tpu.dot_dimension_numbers<[1], [0], [0], [1], [0, 0, 1, 1], [], []>} : vector<8x32xf32>, vector<32x128xf32>, vector<8x128xf32> -> vector<8x128xf32>
    %51 = arith.addf %49, %50 : vector<8x128xf32>
    %52 = math.tanh %51 : vector<8x128xf32>
    %53 = arith.negf %51 : vector<8x128xf32>
    %54 = math.exp %53 : vector<8x128xf32>
    %cst_26 = arith.constant 1.000000e+00 : f32
    %55 = vector.broadcast %cst_26 : f32 to vector<8x128xf32>
    %56 = arith.addf %55, %54 : vector<8x128xf32>
    %57 = arith.divf %55, %56 : vector<8x128xf32>
    %58 = arith.select %5, %52, %57 : vector<8x128xi1>, vector<8x128xf32>
    %59 = vector.extract_strided_slice %58 {offsets = [0, 0], sizes = [8, 32], strides = [1, 1]} : vector<8x128xf32> to vector<8x32xf32>
    %60 = vector.extract_strided_slice %58 {offsets = [0, 32], sizes = [8, 32], strides = [1, 1]} : vector<8x128xf32> to vector<8x32xf32>
    %61 = vector.extract_strided_slice %58 {offsets = [0, 64], sizes = [8, 32], strides = [1, 1]} : vector<8x128xf32> to vector<8x32xf32>
    %62 = vector.extract_strided_slice %58 {offsets = [0, 96], sizes = [8, 32], strides = [1, 1]} : vector<8x128xf32> to vector<8x32xf32>
    %63 = arith.mulf %60, %39 : vector<8x32xf32>
    %64 = arith.mulf %59, %61 : vector<8x32xf32>
    %65 = arith.addf %63, %64 : vector<8x32xf32>
    %66 = math.tanh %65 : vector<8x32xf32>
    %67 = arith.mulf %62, %66 : vector<8x32xf32>
    %c0_i32_27 = arith.constant 0 : i32
    %68 = arith.addi %c0_i32_27, %c1_i32 : i32
    %69 = arith.index_cast %68 : i32 to index
    %c0_28 = arith.constant 0 : index
    %c0_29 = arith.constant 0 : index
    %70 = vector.load %arg8[%69, %c0_28, %c0_29] : memref<8x8x32xf32, #tpu.memory_space<vmem>>, vector<1x8x32xf32>
    %71 = vector.shape_cast %70 : vector<1x8x32xf32> to vector<8x32xf32>
    %72 = vector.shape_cast %67 : vector<8x32xf32> to vector<1x8x32xf32>
    tpu.vector_store %arg8[%69, %c0_28, %c0_29], %72 {strides = array<i32>} : memref<8x8x32xf32, #tpu.memory_space<vmem>>, vector<1x8x32xf32>,
    %c2_i32 = arith.constant 2 : i32
    %73 = arith.index_cast %c2_i32 : i32 to index
    %c0_30 = arith.constant 0 : index
    %c0_31 = arith.constant 0 : index
    %74 = vector.load %arg9[%73, %c0_30, %c0_31] : memref<8x8x128xf32, #tpu.memory_space<vmem>>, vector<1x8x128xf32>
    %75 = vector.shape_cast %74 : vector<1x8x128xf32> to vector<8x128xf32>
    %cst_32 = arith.constant dense<0.000000e+00> : vector<8x128xf32>
    %76 = tpu.matmul %67, %9, %cst_32 {dimension_numbers = #tpu.dot_dimension_numbers<[1], [0], [0], [1], [0, 0, 1, 1], [], []>} : vector<8x32xf32>, vector<32x128xf32>, vector<8x128xf32> -> vector<8x128xf32>
    %77 = arith.addf %75, %76 : vector<8x128xf32>
    %78 = math.tanh %77 : vector<8x128xf32>
    %79 = arith.negf %77 : vector<8x128xf32>
    %80 = math.exp %79 : vector<8x128xf32>
    %cst_33 = arith.constant 1.000000e+00 : f32
    %81 = vector.broadcast %cst_33 : f32 to vector<8x128xf32>
    %82 = arith.addf %81, %80 : vector<8x128xf32>
    %83 = arith.divf %81, %82 : vector<8x128xf32>
    %84 = arith.select %5, %78, %83 : vector<8x128xi1>, vector<8x128xf32>
    %85 = vector.extract_strided_slice %84 {offsets = [0, 0], sizes = [8, 32], strides = [1, 1]} : vector<8x128xf32> to vector<8x32xf32>
    %86 = vector.extract_strided_slice %84 {offsets = [0, 32], sizes = [8, 32], strides = [1, 1]} : vector<8x128xf32> to vector<8x32xf32>
    %87 = vector.extract_strided_slice %84 {offsets = [0, 64], sizes = [8, 32], strides = [1, 1]} : vector<8x128xf32> to vector<8x32xf32>
    %88 = vector.extract_strided_slice %84 {offsets = [0, 96], sizes = [8, 32], strides = [1, 1]} : vector<8x128xf32> to vector<8x32xf32>
    %89 = arith.mulf %86, %65 : vector<8x32xf32>
    %90 = arith.mulf %85, %87 : vector<8x32xf32>
    %91 = arith.addf %89, %90 : vector<8x32xf32>
    %92 = math.tanh %91 : vector<8x32xf32>
    %93 = arith.mulf %88, %92 : vector<8x32xf32>
    %c0_i32_34 = arith.constant 0 : i32
    %94 = arith.addi %c0_i32_34, %c2_i32 : i32
    %95 = arith.index_cast %94 : i32 to index
    %c0_35 = arith.constant 0 : index
    %c0_36 = arith.constant 0 : index
    %96 = vector.load %arg8[%95, %c0_35, %c0_36] : memref<8x8x32xf32, #tpu.memory_space<vmem>>, vector<1x8x32xf32>
    %97 = vector.shape_cast %96 : vector<1x8x32xf32> to vector<8x32xf32>
    %98 = vector.shape_cast %93 : vector<8x32xf32> to vector<1x8x32xf32>
    tpu.vector_store %arg8[%95, %c0_35, %c0_36], %98 {strides = array<i32>} : memref<8x8x32xf32, #tpu.memory_space<vmem>>, vector<1x8x32xf32>,
    %c3_i32 = arith.constant 3 : i32
    %99 = arith.index_cast %c3_i32 : i32 to index
    %c0_37 = arith.constant 0 : index
    %c0_38 = arith.constant 0 : index
    %100 = vector.load %arg9[%99, %c0_37, %c0_38] : memref<8x8x128xf32, #tpu.memory_space<vmem>>, vector<1x8x128xf32>
    %101 = vector.shape_cast %100 : vector<1x8x128xf32> to vector<8x128xf32>
    %cst_39 = arith.constant dense<0.000000e+00> : vector<8x128xf32>
    %102 = tpu.matmul %93, %9, %cst_39 {dimension_numbers = #tpu.dot_dimension_numbers<[1], [0], [0], [1], [0, 0, 1, 1], [], []>} : vector<8x32xf32>, vector<32x128xf32>, vector<8x128xf32> -> vector<8x128xf32>
    %103 = arith.addf %101, %102 : vector<8x128xf32>
    %104 = math.tanh %103 : vector<8x128xf32>
    %105 = arith.negf %103 : vector<8x128xf32>
    %106 = math.exp %105 : vector<8x128xf32>
    %cst_40 = arith.constant 1.000000e+00 : f32
    %107 = vector.broadcast %cst_40 : f32 to vector<8x128xf32>
    %108 = arith.addf %107, %106 : vector<8x128xf32>
    %109 = arith.divf %107, %108 : vector<8x128xf32>
    %110 = arith.select %5, %104, %109 : vector<8x128xi1>, vector<8x128xf32>
    %111 = vector.extract_strided_slice %110 {offsets = [0, 0], sizes = [8, 32], strides = [1, 1]} : vector<8x128xf32> to vector<8x32xf32>
    %112 = vector.extract_strided_slice %110 {offsets = [0, 32], sizes = [8, 32], strides = [1, 1]} : vector<8x128xf32> to vector<8x32xf32>
    %113 = vector.extract_strided_slice %110 {offsets = [0, 64], sizes = [8, 32], strides = [1, 1]} : vector<8x128xf32> to vector<8x32xf32>
    %114 = vector.extract_strided_slice %110 {offsets = [0, 96], sizes = [8, 32], strides = [1, 1]} : vector<8x128xf32> to vector<8x32xf32>
    %115 = arith.mulf %112, %91 : vector<8x32xf32>
    %116 = arith.mulf %111, %113 : vector<8x32xf32>
    %117 = arith.addf %115, %116 : vector<8x32xf32>
    %118 = math.tanh %117 : vector<8x32xf32>
    %119 = arith.mulf %114, %118 : vector<8x32xf32>
    %c0_i32_41 = arith.constant 0 : i32
    %120 = arith.addi %c0_i32_41, %c3_i32 : i32
    %121 = arith.index_cast %120 : i32 to index
    %c0_42 = arith.constant 0 : index
    %c0_43 = arith.constant 0 : index
    %122 = vector.load %arg8[%121, %c0_42, %c0_43] : memref<8x8x32xf32, #tpu.memory_space<vmem>>, vector<1x8x32xf32>
    %123 = vector.shape_cast %122 : vector<1x8x32xf32> to vector<8x32xf32>
    %124 = vector.shape_cast %119 : vector<8x32xf32> to vector<1x8x32xf32>
    tpu.vector_store %arg8[%121, %c0_42, %c0_43], %124 {strides = array<i32>} : memref<8x8x32xf32, #tpu.memory_space<vmem>>, vector<1x8x32xf32>,
    %c4_i32 = arith.constant 4 : i32
    %125 = arith.index_cast %c4_i32 : i32 to index
    %c0_44 = arith.constant 0 : index
    %c0_45 = arith.constant 0 : index
    %126 = vector.load %arg9[%125, %c0_44, %c0_45] : memref<8x8x128xf32, #tpu.memory_space<vmem>>, vector<1x8x128xf32>
    %127 = vector.shape_cast %126 : vector<1x8x128xf32> to vector<8x128xf32>
    %cst_46 = arith.constant dense<0.000000e+00> : vector<8x128xf32>
    %128 = tpu.matmul %119, %9, %cst_46 {dimension_numbers = #tpu.dot_dimension_numbers<[1], [0], [0], [1], [0, 0, 1, 1], [], []>} : vector<8x32xf32>, vector<32x128xf32>, vector<8x128xf32> -> vector<8x128xf32>
    %129 = arith.addf %127, %128 : vector<8x128xf32>
    %130 = math.tanh %129 : vector<8x128xf32>
    %131 = arith.negf %129 : vector<8x128xf32>
    %132 = math.exp %131 : vector<8x128xf32>
    %cst_47 = arith.constant 1.000000e+00 : f32
    %133 = vector.broadcast %cst_47 : f32 to vector<8x128xf32>
    %134 = arith.addf %133, %132 : vector<8x128xf32>
    %135 = arith.divf %133, %134 : vector<8x128xf32>
    %136 = arith.select %5, %130, %135 : vector<8x128xi1>, vector<8x128xf32>
    %137 = vector.extract_strided_slice %136 {offsets = [0, 0], sizes = [8, 32], strides = [1, 1]} : vector<8x128xf32> to vector<8x32xf32>
    %138 = vector.extract_strided_slice %136 {offsets = [0, 32], sizes = [8, 32], strides = [1, 1]} : vector<8x128xf32> to vector<8x32xf32>
    %139 = vector.extract_strided_slice %136 {offsets = [0, 64], sizes = [8, 32], strides = [1, 1]} : vector<8x128xf32> to vector<8x32xf32>
    %140 = vector.extract_strided_slice %136 {offsets = [0, 96], sizes = [8, 32], strides = [1, 1]} : vector<8x128xf32> to vector<8x32xf32>
    %141 = arith.mulf %138, %117 : vector<8x32xf32>
    %142 = arith.mulf %137, %139 : vector<8x32xf32>
    %143 = arith.addf %141, %142 : vector<8x32xf32>
    %144 = math.tanh %143 : vector<8x32xf32>
    %145 = arith.mulf %140, %144 : vector<8x32xf32>
    %c0_i32_48 = arith.constant 0 : i32
    %146 = arith.addi %c0_i32_48, %c4_i32 : i32
    %147 = arith.index_cast %146 : i32 to index
    %c0_49 = arith.constant 0 : index
    %c0_50 = arith.constant 0 : index
    %148 = vector.load %arg8[%147, %c0_49, %c0_50] : memref<8x8x32xf32, #tpu.memory_space<vmem>>, vector<1x8x32xf32>
    %149 = vector.shape_cast %148 : vector<1x8x32xf32> to vector<8x32xf32>
    %150 = vector.shape_cast %145 : vector<8x32xf32> to vector<1x8x32xf32>
    tpu.vector_store %arg8[%147, %c0_49, %c0_50], %150 {strides = array<i32>} : memref<8x8x32xf32, #tpu.memory_space<vmem>>, vector<1x8x32xf32>,
    %c5_i32 = arith.constant 5 : i32
    %151 = arith.index_cast %c5_i32 : i32 to index
    %c0_51 = arith.constant 0 : index
    %c0_52 = arith.constant 0 : index
    %152 = vector.load %arg9[%151, %c0_51, %c0_52] : memref<8x8x128xf32, #tpu.memory_space<vmem>>, vector<1x8x128xf32>
    %153 = vector.shape_cast %152 : vector<1x8x128xf32> to vector<8x128xf32>
    %cst_53 = arith.constant dense<0.000000e+00> : vector<8x128xf32>
    %154 = tpu.matmul %145, %9, %cst_53 {dimension_numbers = #tpu.dot_dimension_numbers<[1], [0], [0], [1], [0, 0, 1, 1], [], []>} : vector<8x32xf32>, vector<32x128xf32>, vector<8x128xf32> -> vector<8x128xf32>
    %155 = arith.addf %153, %154 : vector<8x128xf32>
    %156 = math.tanh %155 : vector<8x128xf32>
    %157 = arith.negf %155 : vector<8x128xf32>
    %158 = math.exp %157 : vector<8x128xf32>
    %cst_54 = arith.constant 1.000000e+00 : f32
    %159 = vector.broadcast %cst_54 : f32 to vector<8x128xf32>
    %160 = arith.addf %159, %158 : vector<8x128xf32>
    %161 = arith.divf %159, %160 : vector<8x128xf32>
    %162 = arith.select %5, %156, %161 : vector<8x128xi1>, vector<8x128xf32>
    %163 = vector.extract_strided_slice %162 {offsets = [0, 0], sizes = [8, 32], strides = [1, 1]} : vector<8x128xf32> to vector<8x32xf32>
    %164 = vector.extract_strided_slice %162 {offsets = [0, 32], sizes = [8, 32], strides = [1, 1]} : vector<8x128xf32> to vector<8x32xf32>
    %165 = vector.extract_strided_slice %162 {offsets = [0, 64], sizes = [8, 32], strides = [1, 1]} : vector<8x128xf32> to vector<8x32xf32>
    %166 = vector.extract_strided_slice %162 {offsets = [0, 96], sizes = [8, 32], strides = [1, 1]} : vector<8x128xf32> to vector<8x32xf32>
    %167 = arith.mulf %164, %143 : vector<8x32xf32>
    %168 = arith.mulf %163, %165 : vector<8x32xf32>
    %169 = arith.addf %167, %168 : vector<8x32xf32>
    %170 = math.tanh %169 : vector<8x32xf32>
    %171 = arith.mulf %166, %170 : vector<8x32xf32>
    %c0_i32_55 = arith.constant 0 : i32
    %172 = arith.addi %c0_i32_55, %c5_i32 : i32
    %173 = arith.index_cast %172 : i32 to index
    %c0_56 = arith.constant 0 : index
    %c0_57 = arith.constant 0 : index
    %174 = vector.load %arg8[%173, %c0_56, %c0_57] : memref<8x8x32xf32, #tpu.memory_space<vmem>>, vector<1x8x32xf32>
    %175 = vector.shape_cast %174 : vector<1x8x32xf32> to vector<8x32xf32>
    %176 = vector.shape_cast %171 : vector<8x32xf32> to vector<1x8x32xf32>
    tpu.vector_store %arg8[%173, %c0_56, %c0_57], %176 {strides = array<i32>} : memref<8x8x32xf32, #tpu.memory_space<vmem>>, vector<1x8x32xf32>,
    %c6_i32 = arith.constant 6 : i32
    %177 = arith.index_cast %c6_i32 : i32 to index
    %c0_58 = arith.constant 0 : index
    %c0_59 = arith.constant 0 : index
    %178 = vector.load %arg9[%177, %c0_58, %c0_59] : memref<8x8x128xf32, #tpu.memory_space<vmem>>, vector<1x8x128xf32>
    %179 = vector.shape_cast %178 : vector<1x8x128xf32> to vector<8x128xf32>
    %cst_60 = arith.constant dense<0.000000e+00> : vector<8x128xf32>
    %180 = tpu.matmul %171, %9, %cst_60 {dimension_numbers = #tpu.dot_dimension_numbers<[1], [0], [0], [1], [0, 0, 1, 1], [], []>} : vector<8x32xf32>, vector<32x128xf32>, vector<8x128xf32> -> vector<8x128xf32>
    %181 = arith.addf %179, %180 : vector<8x128xf32>
    %182 = math.tanh %181 : vector<8x128xf32>
    %183 = arith.negf %181 : vector<8x128xf32>
    %184 = math.exp %183 : vector<8x128xf32>
    %cst_61 = arith.constant 1.000000e+00 : f32
    %185 = vector.broadcast %cst_61 : f32 to vector<8x128xf32>
    %186 = arith.addf %185, %184 : vector<8x128xf32>
    %187 = arith.divf %185, %186 : vector<8x128xf32>
    %188 = arith.select %5, %182, %187 : vector<8x128xi1>, vector<8x128xf32>
    %189 = vector.extract_strided_slice %188 {offsets = [0, 0], sizes = [8, 32], strides = [1, 1]} : vector<8x128xf32> to vector<8x32xf32>
    %190 = vector.extract_strided_slice %188 {offsets = [0, 32], sizes = [8, 32], strides = [1, 1]} : vector<8x128xf32> to vector<8x32xf32>
    %191 = vector.extract_strided_slice %188 {offsets = [0, 64], sizes = [8, 32], strides = [1, 1]} : vector<8x128xf32> to vector<8x32xf32>
    %192 = vector.extract_strided_slice %188 {offsets = [0, 96], sizes = [8, 32], strides = [1, 1]} : vector<8x128xf32> to vector<8x32xf32>
    %193 = arith.mulf %190, %169 : vector<8x32xf32>
    %194 = arith.mulf %189, %191 : vector<8x32xf32>
    %195 = arith.addf %193, %194 : vector<8x32xf32>
    %196 = math.tanh %195 : vector<8x32xf32>
    %197 = arith.mulf %192, %196 : vector<8x32xf32>
    %c0_i32_62 = arith.constant 0 : i32
    %198 = arith.addi %c0_i32_62, %c6_i32 : i32
    %199 = arith.index_cast %198 : i32 to index
    %c0_63 = arith.constant 0 : index
    %c0_64 = arith.constant 0 : index
    %200 = vector.load %arg8[%199, %c0_63, %c0_64] : memref<8x8x32xf32, #tpu.memory_space<vmem>>, vector<1x8x32xf32>
    %201 = vector.shape_cast %200 : vector<1x8x32xf32> to vector<8x32xf32>
    %202 = vector.shape_cast %197 : vector<8x32xf32> to vector<1x8x32xf32>
    tpu.vector_store %arg8[%199, %c0_63, %c0_64], %202 {strides = array<i32>} : memref<8x8x32xf32, #tpu.memory_space<vmem>>, vector<1x8x32xf32>,
    %c7_i32 = arith.constant 7 : i32
    %203 = arith.index_cast %c7_i32 : i32 to index
    %c0_65 = arith.constant 0 : index
    %c0_66 = arith.constant 0 : index
    %204 = vector.load %arg9[%203, %c0_65, %c0_66] : memref<8x8x128xf32, #tpu.memory_space<vmem>>, vector<1x8x128xf32>
    %205 = vector.shape_cast %204 : vector<1x8x128xf32> to vector<8x128xf32>
    %cst_67 = arith.constant dense<0.000000e+00> : vector<8x128xf32>
    %206 = tpu.matmul %197, %9, %cst_67 {dimension_numbers = #tpu.dot_dimension_numbers<[1], [0], [0], [1], [0, 0, 1, 1], [], []>} : vector<8x32xf32>, vector<32x128xf32>, vector<8x128xf32> -> vector<8x128xf32>
    %207 = arith.addf %205, %206 : vector<8x128xf32>
    %208 = math.tanh %207 : vector<8x128xf32>
    %209 = arith.negf %207 : vector<8x128xf32>
    %210 = math.exp %209 : vector<8x128xf32>
    %cst_68 = arith.constant 1.000000e+00 : f32
    %211 = vector.broadcast %cst_68 : f32 to vector<8x128xf32>
    %212 = arith.addf %211, %210 : vector<8x128xf32>
    %213 = arith.divf %211, %212 : vector<8x128xf32>
    %214 = arith.select %5, %208, %213 : vector<8x128xi1>, vector<8x128xf32>
    %215 = vector.extract_strided_slice %214 {offsets = [0, 0], sizes = [8, 32], strides = [1, 1]} : vector<8x128xf32> to vector<8x32xf32>
    %216 = vector.extract_strided_slice %214 {offsets = [0, 32], sizes = [8, 32], strides = [1, 1]} : vector<8x128xf32> to vector<8x32xf32>
    %217 = vector.extract_strided_slice %214 {offsets = [0, 64], sizes = [8, 32], strides = [1, 1]} : vector<8x128xf32> to vector<8x32xf32>
    %218 = vector.extract_strided_slice %214 {offsets = [0, 96], sizes = [8, 32], strides = [1, 1]} : vector<8x128xf32> to vector<8x32xf32>
    %219 = arith.mulf %216, %195 : vector<8x32xf32>
    %220 = arith.mulf %215, %217 : vector<8x32xf32>
    %221 = arith.addf %219, %220 : vector<8x32xf32>
    %222 = math.tanh %221 : vector<8x32xf32>
    %223 = arith.mulf %218, %222 : vector<8x32xf32>
    %c0_i32_69 = arith.constant 0 : i32
    %224 = arith.addi %c0_i32_69, %c7_i32 : i32
    %225 = arith.index_cast %224 : i32 to index
    %c0_70 = arith.constant 0 : index
    %c0_71 = arith.constant 0 : index
    %226 = vector.load %arg8[%225, %c0_70, %c0_71] : memref<8x8x32xf32, #tpu.memory_space<vmem>>, vector<1x8x32xf32>
    %227 = vector.shape_cast %226 : vector<1x8x32xf32> to vector<8x32xf32>
    %228 = vector.shape_cast %223 : vector<8x32xf32> to vector<1x8x32xf32>
    tpu.vector_store %arg8[%225, %c0_70, %c0_71], %228 {strides = array<i32>} : memref<8x8x32xf32, #tpu.memory_space<vmem>>, vector<1x8x32xf32>,
    %c8_i32 = arith.constant 8 : i32
    %c1 = arith.constant 1 : index
    %c0_72 = arith.constant 0 : index
    %c0_73 = arith.constant 0 : index
    %229 = vector.load %arg2[%c1, %c0_72, %c0_73] : memref<2x32x128xf32, #tpu.memory_space<vmem>>, vector<1x32x128xf32>
    %230 = vector.shape_cast %229 : vector<1x32x128xf32> to vector<32x128xf32>
    %c1_74 = arith.constant 1 : index
    %c0_75 = arith.constant 0 : index
    %c0_76 = arith.constant 0 : index
    %231 = vector.load %arg3[%c1_74, %c0_75, %c0_76] : memref<2x32x128xf32, #tpu.memory_space<vmem>>, vector<1x32x128xf32>
    %232 = vector.shape_cast %231 : vector<1x32x128xf32> to vector<32x128xf32>
    %c1_77 = arith.constant 1 : index
    %c0_78 = arith.constant 0 : index
    %c0_79 = arith.constant 0 : index
    %233 = vector.load %arg4[%c1_77, %c0_78, %c0_79] : memref<2x1x128xf32, #tpu.memory_space<vmem>>, vector<1x1x128xf32>
    %234 = vector.shape_cast %233 : vector<1x1x128xf32> to vector<1x128xf32>
    %cst_80 = arith.constant 0.000000e+00 : f32
    %235 = vector.broadcast %cst_80 : f32 to vector<8x32xf32>
    %cst_81 = arith.constant 0.000000e+00 : f32
    %236 = vector.broadcast %cst_81 : f32 to vector<8x32xf32>
    %c0_82 = arith.constant 0 : index
    %c0_83 = arith.constant 0 : index
    %c0_84 = arith.constant 0 : index
    %237 = vector.load %arg8[%c0_82, %c0_83, %c0_84] : memref<8x8x32xf32, #tpu.memory_space<vmem>>, vector<8x8x32xf32>
    %238 = vector.shape_cast %237 : vector<8x8x32xf32> to vector<64x32xf32>
    %cst_85 = arith.constant dense<0.000000e+00> : vector<64x128xf32>
    %239 = tpu.matmul %238, %230, %cst_85 {dimension_numbers = #tpu.dot_dimension_numbers<[1], [0], [0], [1], [0, 0, 1, 1], [], []>} : vector<64x32xf32>, vector<32x128xf32>, vector<64x128xf32> -> vector<64x128xf32>
    %240 = vector.broadcast %234 : vector<1x128xf32> to vector<64x128xf32>
    %241 = arith.addf %239, %240 : vector<64x128xf32>
    %242 = vector.shape_cast %241 : vector<64x128xf32> to vector<8x8x128xf32>
    %c0_86 = arith.constant 0 : index
    %c0_87 = arith.constant 0 : index
    %c0_88 = arith.constant 0 : index
    %243 = vector.load %arg9[%c0_86, %c0_87, %c0_88] : memref<8x8x128xf32, #tpu.memory_space<vmem>>, vector<8x8x128xf32>
    tpu.vector_store %arg9[%c0_86, %c0_87, %c0_88], %242 {strides = array<i32>} : memref<8x8x128xf32, #tpu.memory_space<vmem>>, vector<8x8x128xf32>,
    %c0_i32_89 = arith.constant 0 : i32
    %244 = arith.index_cast %c0_i32_89 : i32 to index
    %c0_90 = arith.constant 0 : index
    %c0_91 = arith.constant 0 : index
    %245 = vector.load %arg9[%244, %c0_90, %c0_91] : memref<8x8x128xf32, #tpu.memory_space<vmem>>, vector<1x8x128xf32>
    %246 = vector.shape_cast %245 : vector<1x8x128xf32> to vector<8x128xf32>
    %cst_92 = arith.constant dense<0.000000e+00> : vector<8x128xf32>
    %247 = tpu.matmul %235, %232, %cst_92 {dimension_numbers = #tpu.dot_dimension_numbers<[1], [0], [0], [1], [0, 0, 1, 1], [], []>} : vector<8x32xf32>, vector<32x128xf32>, vector<8x128xf32> -> vector<8x128xf32>
    %248 = arith.addf %246, %247 : vector<8x128xf32>
    %249 = math.tanh %248 : vector<8x128xf32>
    %250 = arith.negf %248 : vector<8x128xf32>
    %251 = math.exp %250 : vector<8x128xf32>
    %cst_93 = arith.constant 1.000000e+00 : f32
    %252 = vector.broadcast %cst_93 : f32 to vector<8x128xf32>
    %253 = arith.addf %252, %251 : vector<8x128xf32>
    %254 = arith.divf %252, %253 : vector<8x128xf32>
    %255 = arith.select %5, %249, %254 : vector<8x128xi1>, vector<8x128xf32>
    %256 = vector.extract_strided_slice %255 {offsets = [0, 0], sizes = [8, 32], strides = [1, 1]} : vector<8x128xf32> to vector<8x32xf32>
    %257 = vector.extract_strided_slice %255 {offsets = [0, 32], sizes = [8, 32], strides = [1, 1]} : vector<8x128xf32> to vector<8x32xf32>
    %258 = vector.extract_strided_slice %255 {offsets = [0, 64], sizes = [8, 32], strides = [1, 1]} : vector<8x128xf32> to vector<8x32xf32>
    %259 = vector.extract_strided_slice %255 {offsets = [0, 96], sizes = [8, 32], strides = [1, 1]} : vector<8x128xf32> to vector<8x32xf32>
    %260 = arith.mulf %257, %236 : vector<8x32xf32>
    %261 = arith.mulf %256, %258 : vector<8x32xf32>
    %262 = arith.addf %260, %261 : vector<8x32xf32>
    %263 = math.tanh %262 : vector<8x32xf32>
    %264 = arith.mulf %259, %263 : vector<8x32xf32>
    %c1_i32_94 = arith.constant 1 : i32
    %265 = arith.index_cast %c1_i32_94 : i32 to index
    %c0_95 = arith.constant 0 : index
    %c0_96 = arith.constant 0 : index
    %266 = vector.load %arg9[%265, %c0_95, %c0_96] : memref<8x8x128xf32, #tpu.memory_space<vmem>>, vector<1x8x128xf32>
    %267 = vector.shape_cast %266 : vector<1x8x128xf32> to vector<8x128xf32>
    %cst_97 = arith.constant dense<0.000000e+00> : vector<8x128xf32>
    %268 = tpu.matmul %264, %232, %cst_97 {dimension_numbers = #tpu.dot_dimension_numbers<[1], [0], [0], [1], [0, 0, 1, 1], [], []>} : vector<8x32xf32>, vector<32x128xf32>, vector<8x128xf32> -> vector<8x128xf32>
    %269 = arith.addf %267, %268 : vector<8x128xf32>
    %270 = math.tanh %269 : vector<8x128xf32>
    %271 = arith.negf %269 : vector<8x128xf32>
    %272 = math.exp %271 : vector<8x128xf32>
    %cst_98 = arith.constant 1.000000e+00 : f32
    %273 = vector.broadcast %cst_98 : f32 to vector<8x128xf32>
    %274 = arith.addf %273, %272 : vector<8x128xf32>
    %275 = arith.divf %273, %274 : vector<8x128xf32>
    %276 = arith.select %5, %270, %275 : vector<8x128xi1>, vector<8x128xf32>
    %277 = vector.extract_strided_slice %276 {offsets = [0, 0], sizes = [8, 32], strides = [1, 1]} : vector<8x128xf32> to vector<8x32xf32>
    %278 = vector.extract_strided_slice %276 {offsets = [0, 32], sizes = [8, 32], strides = [1, 1]} : vector<8x128xf32> to vector<8x32xf32>
    %279 = vector.extract_strided_slice %276 {offsets = [0, 64], sizes = [8, 32], strides = [1, 1]} : vector<8x128xf32> to vector<8x32xf32>
    %280 = vector.extract_strided_slice %276 {offsets = [0, 96], sizes = [8, 32], strides = [1, 1]} : vector<8x128xf32> to vector<8x32xf32>
    %281 = arith.mulf %278, %262 : vector<8x32xf32>
    %282 = arith.mulf %277, %279 : vector<8x32xf32>
    %283 = arith.addf %281, %282 : vector<8x32xf32>
    %284 = math.tanh %283 : vector<8x32xf32>
    %285 = arith.mulf %280, %284 : vector<8x32xf32>
    %c2_i32_99 = arith.constant 2 : i32
    %286 = arith.index_cast %c2_i32_99 : i32 to index
    %c0_100 = arith.constant 0 : index
    %c0_101 = arith.constant 0 : index
    %287 = vector.load %arg9[%286, %c0_100, %c0_101] : memref<8x8x128xf32, #tpu.memory_space<vmem>>, vector<1x8x128xf32>
    %288 = vector.shape_cast %287 : vector<1x8x128xf32> to vector<8x128xf32>
    %cst_102 = arith.constant dense<0.000000e+00> : vector<8x128xf32>
    %289 = tpu.matmul %285, %232, %cst_102 {dimension_numbers = #tpu.dot_dimension_numbers<[1], [0], [0], [1], [0, 0, 1, 1], [], []>} : vector<8x32xf32>, vector<32x128xf32>, vector<8x128xf32> -> vector<8x128xf32>
    %290 = arith.addf %288, %289 : vector<8x128xf32>
    %291 = math.tanh %290 : vector<8x128xf32>
    %292 = arith.negf %290 : vector<8x128xf32>
    %293 = math.exp %292 : vector<8x128xf32>
    %cst_103 = arith.constant 1.000000e+00 : f32
    %294 = vector.broadcast %cst_103 : f32 to vector<8x128xf32>
    %295 = arith.addf %294, %293 : vector<8x128xf32>
    %296 = arith.divf %294, %295 : vector<8x128xf32>
    %297 = arith.select %5, %291, %296 : vector<8x128xi1>, vector<8x128xf32>
    %298 = vector.extract_strided_slice %297 {offsets = [0, 0], sizes = [8, 32], strides = [1, 1]} : vector<8x128xf32> to vector<8x32xf32>
    %299 = vector.extract_strided_slice %297 {offsets = [0, 32], sizes = [8, 32], strides = [1, 1]} : vector<8x128xf32> to vector<8x32xf32>
    %300 = vector.extract_strided_slice %297 {offsets = [0, 64], sizes = [8, 32], strides = [1, 1]} : vector<8x128xf32> to vector<8x32xf32>
    %301 = vector.extract_strided_slice %297 {offsets = [0, 96], sizes = [8, 32], strides = [1, 1]} : vector<8x128xf32> to vector<8x32xf32>
    %302 = arith.mulf %299, %283 : vector<8x32xf32>
    %303 = arith.mulf %298, %300 : vector<8x32xf32>
    %304 = arith.addf %302, %303 : vector<8x32xf32>
    %305 = math.tanh %304 : vector<8x32xf32>
    %306 = arith.mulf %301, %305 : vector<8x32xf32>
    %c3_i32_104 = arith.constant 3 : i32
    %307 = arith.index_cast %c3_i32_104 : i32 to index
    %c0_105 = arith.constant 0 : index
    %c0_106 = arith.constant 0 : index
    %308 = vector.load %arg9[%307, %c0_105, %c0_106] : memref<8x8x128xf32, #tpu.memory_space<vmem>>, vector<1x8x128xf32>
    %309 = vector.shape_cast %308 : vector<1x8x128xf32> to vector<8x128xf32>
    %cst_107 = arith.constant dense<0.000000e+00> : vector<8x128xf32>
    %310 = tpu.matmul %306, %232, %cst_107 {dimension_numbers = #tpu.dot_dimension_numbers<[1], [0], [0], [1], [0, 0, 1, 1], [], []>} : vector<8x32xf32>, vector<32x128xf32>, vector<8x128xf32> -> vector<8x128xf32>
    %311 = arith.addf %309, %310 : vector<8x128xf32>
    %312 = math.tanh %311 : vector<8x128xf32>
    %313 = arith.negf %311 : vector<8x128xf32>
    %314 = math.exp %313 : vector<8x128xf32>
    %cst_108 = arith.constant 1.000000e+00 : f32
    %315 = vector.broadcast %cst_108 : f32 to vector<8x128xf32>
    %316 = arith.addf %315, %314 : vector<8x128xf32>
    %317 = arith.divf %315, %316 : vector<8x128xf32>
    %318 = arith.select %5, %312, %317 : vector<8x128xi1>, vector<8x128xf32>
    %319 = vector.extract_strided_slice %318 {offsets = [0, 0], sizes = [8, 32], strides = [1, 1]} : vector<8x128xf32> to vector<8x32xf32>
    %320 = vector.extract_strided_slice %318 {offsets = [0, 32], sizes = [8, 32], strides = [1, 1]} : vector<8x128xf32> to vector<8x32xf32>
    %321 = vector.extract_strided_slice %318 {offsets = [0, 64], sizes = [8, 32], strides = [1, 1]} : vector<8x128xf32> to vector<8x32xf32>
    %322 = vector.extract_strided_slice %318 {offsets = [0, 96], sizes = [8, 32], strides = [1, 1]} : vector<8x128xf32> to vector<8x32xf32>
    %323 = arith.mulf %320, %304 : vector<8x32xf32>
    %324 = arith.mulf %319, %321 : vector<8x32xf32>
    %325 = arith.addf %323, %324 : vector<8x32xf32>
    %326 = math.tanh %325 : vector<8x32xf32>
    %327 = arith.mulf %322, %326 : vector<8x32xf32>
    %c4_i32_109 = arith.constant 4 : i32
    %328 = arith.index_cast %c4_i32_109 : i32 to index
    %c0_110 = arith.constant 0 : index
    %c0_111 = arith.constant 0 : index
    %329 = vector.load %arg9[%328, %c0_110, %c0_111] : memref<8x8x128xf32, #tpu.memory_space<vmem>>, vector<1x8x128xf32>
    %330 = vector.shape_cast %329 : vector<1x8x128xf32> to vector<8x128xf32>
    %cst_112 = arith.constant dense<0.000000e+00> : vector<8x128xf32>
    %331 = tpu.matmul %327, %232, %cst_112 {dimension_numbers = #tpu.dot_dimension_numbers<[1], [0], [0], [1], [0, 0, 1, 1], [], []>} : vector<8x32xf32>, vector<32x128xf32>, vector<8x128xf32> -> vector<8x128xf32>
    %332 = arith.addf %330, %331 : vector<8x128xf32>
    %333 = math.tanh %332 : vector<8x128xf32>
    %334 = arith.negf %332 : vector<8x128xf32>
    %335 = math.exp %334 : vector<8x128xf32>
    %cst_113 = arith.constant 1.000000e+00 : f32
    %336 = vector.broadcast %cst_113 : f32 to vector<8x128xf32>
    %337 = arith.addf %336, %335 : vector<8x128xf32>
    %338 = arith.divf %336, %337 : vector<8x128xf32>
    %339 = arith.select %5, %333, %338 : vector<8x128xi1>, vector<8x128xf32>
    %340 = vector.extract_strided_slice %339 {offsets = [0, 0], sizes = [8, 32], strides = [1, 1]} : vector<8x128xf32> to vector<8x32xf32>
    %341 = vector.extract_strided_slice %339 {offsets = [0, 32], sizes = [8, 32], strides = [1, 1]} : vector<8x128xf32> to vector<8x32xf32>
    %342 = vector.extract_strided_slice %339 {offsets = [0, 64], sizes = [8, 32], strides = [1, 1]} : vector<8x128xf32> to vector<8x32xf32>
    %343 = vector.extract_strided_slice %339 {offsets = [0, 96], sizes = [8, 32], strides = [1, 1]} : vector<8x128xf32> to vector<8x32xf32>
    %344 = arith.mulf %341, %325 : vector<8x32xf32>
    %345 = arith.mulf %340, %342 : vector<8x32xf32>
    %346 = arith.addf %344, %345 : vector<8x32xf32>
    %347 = math.tanh %346 : vector<8x32xf32>
    %348 = arith.mulf %343, %347 : vector<8x32xf32>
    %c5_i32_114 = arith.constant 5 : i32
    %349 = arith.index_cast %c5_i32_114 : i32 to index
    %c0_115 = arith.constant 0 : index
    %c0_116 = arith.constant 0 : index
    %350 = vector.load %arg9[%349, %c0_115, %c0_116] : memref<8x8x128xf32, #tpu.memory_space<vmem>>, vector<1x8x128xf32>
    %351 = vector.shape_cast %350 : vector<1x8x128xf32> to vector<8x128xf32>
    %cst_117 = arith.constant dense<0.000000e+00> : vector<8x128xf32>
    %352 = tpu.matmul %348, %232, %cst_117 {dimension_numbers = #tpu.dot_dimension_numbers<[1], [0], [0], [1], [0, 0, 1, 1], [], []>} : vector<8x32xf32>, vector<32x128xf32>, vector<8x128xf32> -> vector<8x128xf32>
    %353 = arith.addf %351, %352 : vector<8x128xf32>
    %354 = math.tanh %353 : vector<8x128xf32>
    %355 = arith.negf %353 : vector<8x128xf32>
    %356 = math.exp %355 : vector<8x128xf32>
    %cst_118 = arith.constant 1.000000e+00 : f32
    %357 = vector.broadcast %cst_118 : f32 to vector<8x128xf32>
    %358 = arith.addf %357, %356 : vector<8x128xf32>
    %359 = arith.divf %357, %358 : vector<8x128xf32>
    %360 = arith.select %5, %354, %359 : vector<8x128xi1>, vector<8x128xf32>
    %361 = vector.extract_strided_slice %360 {offsets = [0, 0], sizes = [8, 32], strides = [1, 1]} : vector<8x128xf32> to vector<8x32xf32>
    %362 = vector.extract_strided_slice %360 {offsets = [0, 32], sizes = [8, 32], strides = [1, 1]} : vector<8x128xf32> to vector<8x32xf32>
    %363 = vector.extract_strided_slice %360 {offsets = [0, 64], sizes = [8, 32], strides = [1, 1]} : vector<8x128xf32> to vector<8x32xf32>
    %364 = vector.extract_strided_slice %360 {offsets = [0, 96], sizes = [8, 32], strides = [1, 1]} : vector<8x128xf32> to vector<8x32xf32>
    %365 = arith.mulf %362, %346 : vector<8x32xf32>
    %366 = arith.mulf %361, %363 : vector<8x32xf32>
    %367 = arith.addf %365, %366 : vector<8x32xf32>
    %368 = math.tanh %367 : vector<8x32xf32>
    %369 = arith.mulf %364, %368 : vector<8x32xf32>
    %c6_i32_119 = arith.constant 6 : i32
    %370 = arith.index_cast %c6_i32_119 : i32 to index
    %c0_120 = arith.constant 0 : index
    %c0_121 = arith.constant 0 : index
    %371 = vector.load %arg9[%370, %c0_120, %c0_121] : memref<8x8x128xf32, #tpu.memory_space<vmem>>, vector<1x8x128xf32>
    %372 = vector.shape_cast %371 : vector<1x8x128xf32> to vector<8x128xf32>
    %cst_122 = arith.constant dense<0.000000e+00> : vector<8x128xf32>
    %373 = tpu.matmul %369, %232, %cst_122 {dimension_numbers = #tpu.dot_dimension_numbers<[1], [0], [0], [1], [0, 0, 1, 1], [], []>} : vector<8x32xf32>, vector<32x128xf32>, vector<8x128xf32> -> vector<8x128xf32>
    %374 = arith.addf %372, %373 : vector<8x128xf32>
    %375 = math.tanh %374 : vector<8x128xf32>
    %376 = arith.negf %374 : vector<8x128xf32>
    %377 = math.exp %376 : vector<8x128xf32>
    %cst_123 = arith.constant 1.000000e+00 : f32
    %378 = vector.broadcast %cst_123 : f32 to vector<8x128xf32>
    %379 = arith.addf %378, %377 : vector<8x128xf32>
    %380 = arith.divf %378, %379 : vector<8x128xf32>
    %381 = arith.select %5, %375, %380 : vector<8x128xi1>, vector<8x128xf32>
    %382 = vector.extract_strided_slice %381 {offsets = [0, 0], sizes = [8, 32], strides = [1, 1]} : vector<8x128xf32> to vector<8x32xf32>
    %383 = vector.extract_strided_slice %381 {offsets = [0, 32], sizes = [8, 32], strides = [1, 1]} : vector<8x128xf32> to vector<8x32xf32>
    %384 = vector.extract_strided_slice %381 {offsets = [0, 64], sizes = [8, 32], strides = [1, 1]} : vector<8x128xf32> to vector<8x32xf32>
    %385 = vector.extract_strided_slice %381 {offsets = [0, 96], sizes = [8, 32], strides = [1, 1]} : vector<8x128xf32> to vector<8x32xf32>
    %386 = arith.mulf %383, %367 : vector<8x32xf32>
    %387 = arith.mulf %382, %384 : vector<8x32xf32>
    %388 = arith.addf %386, %387 : vector<8x32xf32>
    %389 = math.tanh %388 : vector<8x32xf32>
    %390 = arith.mulf %385, %389 : vector<8x32xf32>
    %c7_i32_124 = arith.constant 7 : i32
    %391 = arith.index_cast %c7_i32_124 : i32 to index
    %c0_125 = arith.constant 0 : index
    %c0_126 = arith.constant 0 : index
    %392 = vector.load %arg9[%391, %c0_125, %c0_126] : memref<8x8x128xf32, #tpu.memory_space<vmem>>, vector<1x8x128xf32>
    %393 = vector.shape_cast %392 : vector<1x8x128xf32> to vector<8x128xf32>
    %cst_127 = arith.constant dense<0.000000e+00> : vector<8x128xf32>
    %394 = tpu.matmul %390, %232, %cst_127 {dimension_numbers = #tpu.dot_dimension_numbers<[1], [0], [0], [1], [0, 0, 1, 1], [], []>} : vector<8x32xf32>, vector<32x128xf32>, vector<8x128xf32> -> vector<8x128xf32>
    %395 = arith.addf %393, %394 : vector<8x128xf32>
    %396 = math.tanh %395 : vector<8x128xf32>
    %397 = arith.negf %395 : vector<8x128xf32>
    %398 = math.exp %397 : vector<8x128xf32>
    %cst_128 = arith.constant 1.000000e+00 : f32
    %399 = vector.broadcast %cst_128 : f32 to vector<8x128xf32>
    %400 = arith.addf %399, %398 : vector<8x128xf32>
    %401 = arith.divf %399, %400 : vector<8x128xf32>
    %402 = arith.select %5, %396, %401 : vector<8x128xi1>, vector<8x128xf32>
    %403 = vector.extract_strided_slice %402 {offsets = [0, 0], sizes = [8, 32], strides = [1, 1]} : vector<8x128xf32> to vector<8x32xf32>
    %404 = vector.extract_strided_slice %402 {offsets = [0, 32], sizes = [8, 32], strides = [1, 1]} : vector<8x128xf32> to vector<8x32xf32>
    %405 = vector.extract_strided_slice %402 {offsets = [0, 64], sizes = [8, 32], strides = [1, 1]} : vector<8x128xf32> to vector<8x32xf32>
    %406 = vector.extract_strided_slice %402 {offsets = [0, 96], sizes = [8, 32], strides = [1, 1]} : vector<8x128xf32> to vector<8x32xf32>
    %407 = arith.mulf %404, %388 : vector<8x32xf32>
    %408 = arith.mulf %403, %405 : vector<8x32xf32>
    %409 = arith.addf %407, %408 : vector<8x32xf32>
    %410 = math.tanh %409 : vector<8x32xf32>
    %411 = arith.mulf %406, %410 : vector<8x32xf32>
    %c8_i32_129 = arith.constant 8 : i32
    %c0_130 = arith.constant 0 : index
    %c0_131 = arith.constant 0 : index
    %412 = vector.load %arg5[%c0_130, %c0_131] : memref<32x128xf32, #tpu.memory_space<vmem>>, vector<32x128xf32>
    %cst_132 = arith.constant dense<0.000000e+00> : vector<8x128xf32>
    %413 = tpu.matmul %411, %412, %cst_132 {dimension_numbers = #tpu.dot_dimension_numbers<[1], [0], [0], [1], [0, 0, 1, 1], [], []>} : vector<8x32xf32>, vector<32x128xf32>, vector<8x128xf32> -> vector<8x128xf32>
    %c0_133 = arith.constant 0 : index
    %c0_134 = arith.constant 0 : index
    %414 = vector.load %arg6[%c0_133, %c0_134] : memref<1x128xf32, #tpu.memory_space<vmem>>, vector<1x128xf32>
    %415 = vector.broadcast %414 : vector<1x128xf32> to vector<8x128xf32>
    %416 = arith.addf %413, %415 : vector<8x128xf32>
    %cst_135 = arith.constant 0.000000e+00 : f32
    %417 = vector.broadcast %cst_135 : f32 to vector<8x128xf32>
    %418 = arith.maximumf %416, %417 : vector<8x128xf32>
    %c0_136 = arith.constant 0 : index
    %c0_137 = arith.constant 0 : index
    %419 = vector.load %arg7[%c0_136, %c0_137] : memref<8x128xf32, #tpu.memory_space<vmem>>, vector<8x128xf32>
    tpu.vector_store %arg7[%c0_136, %c0_137], %418 {strides = array<i32>} : memref<8x128xf32, #tpu.memory_space<vmem>>, vector<8x128xf32>,
    return
  }
  func.func @transform_0(%arg0: i32) -> (i32, i32, i32) {
    %c0_i32 = arith.constant 0 : i32
    %c0_i32_0 = arith.constant 0 : i32
    %c0_i32_1 = arith.constant 0 : i32
    return %c0_i32, %arg0, %c0_i32_0 : i32, i32, i32
  }
  func.func @transform_1(%arg0: i32) -> (i32, i32, i32) {
    %c0_i32 = arith.constant 0 : i32
    %c0_i32_0 = arith.constant 0 : i32
    %c0_i32_1 = arith.constant 0 : i32
    %c0_i32_2 = arith.constant 0 : i32
    return %c0_i32, %c0_i32_0, %c0_i32_1 : i32, i32, i32
  }
  func.func @transform_2(%arg0: i32) -> (i32, i32, i32) {
    %c0_i32 = arith.constant 0 : i32
    %c0_i32_0 = arith.constant 0 : i32
    %c0_i32_1 = arith.constant 0 : i32
    %c0_i32_2 = arith.constant 0 : i32
    return %c0_i32, %c0_i32_0, %c0_i32_1 : i32, i32, i32
  }
  func.func @transform_3(%arg0: i32) -> (i32, i32, i32) {
    %c0_i32 = arith.constant 0 : i32
    %c0_i32_0 = arith.constant 0 : i32
    %c0_i32_1 = arith.constant 0 : i32
    %c0_i32_2 = arith.constant 0 : i32
    return %c0_i32, %c0_i32_0, %c0_i32_1 : i32, i32, i32
  }
  func.func @transform_4(%arg0: i32) -> (i32, i32) {
    %c0_i32 = arith.constant 0 : i32
    %c0_i32_0 = arith.constant 0 : i32
    %c0_i32_1 = arith.constant 0 : i32
    return %c0_i32, %c0_i32_0 : i32, i32
  }
  func.func @transform_5(%arg0: i32) -> (i32, i32) {
    %c0_i32 = arith.constant 0 : i32
    %c0_i32_0 = arith.constant 0 : i32
    %c0_i32_1 = arith.constant 0 : i32
    return %c0_i32, %c0_i32_0 : i32, i32
  }
  func.func @transform_6(%arg0: i32) -> (i32, i32) {
    %c0_i32 = arith.constant 0 : i32
    %c0_i32_0 = arith.constant 0 : i32
    return %arg0, %c0_i32 : i32, i32
  }
}

</mosaic_0001>

<llo_original>
// kernel: tpu_custom_call.1
$region0: #{tpu_custom_call.1}
  #allocation0 [shape = 'u32[]', space=smem, size = 0x4, offset = 0x4, fixed_abs, tag = 'smem constant byte address 0x4 - core index']
  #allocation1 [shape = 'u32[144,128]{1,0:T(1,128)}', space=vmem, size = 0x12000, scoped, tag = 'internal scratch']
  #allocation2 [shape = 'f32[8,8,32]{2,1,0:T(8,128)}', space=vmem, size = 0x8000, scoped, tag = 'scratch operand']
  #allocation3 [shape = 'f32[8,8,128]{2,1,0:T(8,128)}', space=vmem, size = 0x8000, scoped, tag = 'scratch operand']
  %s0 = inlined_call_operand.hbm [shape: f32[8,8,32], index: 0, kind: input, shape index: {}]
  %s1 = inlined_call_operand.hbm [shape: f32[2,32,128], index: 1, kind: input, shape index: {}]
  %s2 = inlined_call_operand.hbm [shape: f32[2,32,128], index: 2, kind: input, shape index: {}]
  %s3 = inlined_call_operand.vmem [shape: f32[2,1,128], index: 3, kind: input, shape index: {}]
  %s4 = inlined_call_operand.hbm [shape: f32[32,128], index: 4, kind: input, shape index: {}]
  %s5 = inlined_call_operand.vmem [shape: f32[1,128], index: 5, kind: input, shape index: {}]
  %s6 = inlined_call_operand.hbm [shape: f32[8,128], index: 6, kind: output, shape index: {}]
  %s7 = sld [smem:[#allocation0]]
  $region50: #{tpu_custom_call.1} parent=0
    _
  %s9 = ssub.s32 1, %s7
  %s10 = scalar_select 0, %s9, %s7
  $region1: #{tpu_custom_call.1} parent=0
    #allocation4 [shape = 'u8[32768]{0}', space=vmem, size = 0x8000, scoped, tag = 'input window, operand 0, single buffered']
    #allocation5 [shape = 's32[1]{0}', space=sflag, size = 0x4, scoped, tag = 'scoped memory for tpu_custom_call.1']
    #allocation6 [shape = 's32[1]{0}', space=sflag, size = 0x4, scoped, tag = 'scoped memory for tpu_custom_call.1']
    #allocation7 [shape = 'u8[32768]{0}', space=vmem, size = 0x8000, scoped, tag = 'input window, operand 1, single buffered']
    #allocation8 [shape = 's32[1]{0}', space=sflag, size = 0x4, scoped, tag = 'scoped memory for tpu_custom_call.1']
    #allocation9 [shape = 'u8[32768]{0}', space=vmem, size = 0x8000, scoped, tag = 'input window, operand 2, single buffered']
    #allocation10 [shape = 'u8[16384]{0}', space=vmem, size = 0x4000, scoped, tag = 'input window, operand 4, single buffered']
    #allocation11 [shape = 's32[1]{0}', space=sflag, size = 0x4, scoped, tag = 'scoped memory for tpu_custom_call.1']
    #allocation12 [shape = 'u8[4096]{0}', space=vmem, size = 0x1000, scoped, tag = 'output window, operand 0, single buffered']
    %11 = vsyncpa [#allocation5], 0
    %12 = vsyncpa [#allocation8], 0
    %13 = vsyncpa [#allocation11], 0
    %14 = vsyncpa [#allocation6], 0
    // Predicated region
    $region2: #{tpu_custom_call.1} parent=1 // pred_check
      _
    $region3: #{tpu_custom_call.1} parent=1 // pred_check_branch
      %16 = sbr.rel (0) target = $region5
    $region4: #{tpu_custom_call.1} parent=1 // pred_region
      %s18 = ssub.s32 1024, 1024
      %19 = vsyncadd [#allocation5], %s18
      %s20 = sshll.u32 [#allocation4], 4
      %s21 = int_to_ptr.vmem [resolvable:$true] %s20
      %26 = dma.hbm_to_vmem [thread:$0]  %s0, 1024, %s21, [#allocation5], 128, 128, 8
    $region5: #{tpu_custom_call.1} parent=1 // pred_fallthru
      _
    // Predicated region
    $region6: #{tpu_custom_call.1} parent=1 // pred_check
      _
    $region7: #{tpu_custom_call.1} parent=1 // pred_check_branch
      %28 = sbr.rel (0) target = $region9
    $region8: #{tpu_custom_call.1} parent=1 // pred_region
      %s30 = ssub.s32 1024, 1024
      %31 = vsyncadd [#allocation8], %s30
      %s32 = sshll.u32 [#allocation7], 4
      %s33 = int_to_ptr.vmem [resolvable:$true] %s32
      %38 = dma.hbm_to_vmem [thread:$0]  %s1, 1024, %s33, [#allocation8], 128, 128, 8
    $region9: #{tpu_custom_call.1} parent=1 // pred_fallthru
      _
    // Predicated region
    $region10: #{tpu_custom_call.1} parent=1 // pred_check
      _
    $region11: #{tpu_custom_call.1} parent=1 // pred_check_branch
      %40 = sbr.rel (0) target = $region13
    $region12: #{tpu_custom_call.1} parent=1 // pred_region
      %s42 = ssub.s32 1024, 1024
      %43 = vsyncadd [#allocation8], %s42
      %s44 = sshll.u32 [#allocation9], 4
      %s45 = int_to_ptr.vmem [resolvable:$true] %s44
      %50 = dma.hbm_to_vmem [thread:$0]  %s2, 1024, %s45, [#allocation8], 128, 128, 8
    $region13: #{tpu_custom_call.1} parent=1 // pred_fallthru
      _
    // Predicated region
    $region14: #{tpu_custom_call.1} parent=1 // pred_check
      _
    $region15: #{tpu_custom_call.1} parent=1 // pred_check_branch
      %52 = sbr.rel (0) target = $region17
    $region16: #{tpu_custom_call.1} parent=1 // pred_region
      _
    $region17: #{tpu_custom_call.1} parent=1 // pred_fallthru
      _
    // Predicated region
    $region18: #{tpu_custom_call.1} parent=1 // pred_check
      _
    $region19: #{tpu_custom_call.1} parent=1 // pred_check_branch
      %54 = sbr.rel (0) target = $region21
    $region20: #{tpu_custom_call.1} parent=1 // pred_region
      %s56 = ssub.s32 512, 512
      %57 = vsyncadd [#allocation11], %s56
      %s58 = sshll.u32 [#allocation10], 4
      %s59 = int_to_ptr.vmem [resolvable:$true] %s58
      %64 = dma.hbm_to_vmem [thread:$0]  %s4, 512, %s59, [#allocation11], 128, 128, 8
    $region21: #{tpu_custom_call.1} parent=1 // pred_fallthru
      _
    // Predicated region
    $region22: #{tpu_custom_call.1} parent=1 // pred_check
      _
    $region23: #{tpu_custom_call.1} parent=1 // pred_check_branch
      %66 = sbr.rel (0) target = $region25
    $region24: #{tpu_custom_call.1} parent=1 // pred_region
      _
    $region25: #{tpu_custom_call.1} parent=1 // pred_fallthru
      _
    // Predicated region
    $region26: #{tpu_custom_call.1} parent=1 // pred_check
      _
    $region27: #{tpu_custom_call.1} parent=1 // pred_check_branch
      %68 = sbr.rel (0) target = $region29
    $region28: #{tpu_custom_call.1} parent=1 // pred_region
      %69 = dma.done [#allocation5], 1024
    $region29: #{tpu_custom_call.1} parent=1 // pred_fallthru
      _
    // Predicated region
    $region30: #{tpu_custom_call.1} parent=1 // pred_check
      _
    $region31: #{tpu_custom_call.1} parent=1 // pred_check_branch
      %71 = sbr.rel (0) target = $region33
    $region32: #{tpu_custom_call.1} parent=1 // pred_region
      %72 = dma.done [#allocation8], 1024
    $region33: #{tpu_custom_call.1} parent=1 // pred_fallthru
      _
    // Predicated region
    $region34: #{tpu_custom_call.1} parent=1 // pred_check
      _
    $region35: #{tpu_custom_call.1} parent=1 // pred_check_branch
      %74 = sbr.rel (0) target = $region37
    $region36: #{tpu_custom_call.1} parent=1 // pred_region
      %75 = dma.done [#allocation8], 1024
    $region37: #{tpu_custom_call.1} parent=1 // pred_fallthru
      _
    // Predicated region
    $region38: #{tpu_custom_call.1} parent=1 // pred_check
      _
    $region39: #{tpu_custom_call.1} parent=1 // pred_check_branch
      %77 = sbr.rel (0) target = $region41
    $region40: #{tpu_custom_call.1} parent=1 // pred_region
      %78 = dma.done [#allocation11], 512
    $region41: #{tpu_custom_call.1} parent=1 // pred_fallthru
      _
    %v79 = vlaneseq
    %v80 = vand.u32 %v79, 127
    %vm81 = vcmp.ge.s32.totalorder %v80, 64
    %vm82 = vcmp.lt.s32.totalorder %v80, 96
    %vm83 = vmand %vm81, %vm82
    %v84 = vld [vmem:[#allocation7] sm:$0xff]
    %v85 = vld [vmem:[#allocation7 + $0x8] sm:$0xff]
    %v86 = vld [vmem:[#allocation7 + $0x10] sm:$0xff]
    %v87 = vld [vmem:[#allocation7 + $0x18] sm:$0xff]
    %v88 = vld [vmem:[#allocation9] sm:$0xff]
    %v89 = vld [vmem:[#allocation9 + $0x8] sm:$0xff]
    %v90 = vld [vmem:[#allocation9 + $0x10] sm:$0xff]
    %v91 = vld [vmem:[#allocation9 + $0x18] sm:$0xff]
    %v92 = vld [vmem:[%s3] sm:$0x1]
    %v93 = vld [vmem:[#allocation4] sm:$0xff]
    %v94 = vld [vmem:[#allocation4 + $0x8] sm:$0xff]
    %v95 = vld [vmem:[#allocation4 + $0x10] sm:$0xff]
    %v96 = vld [vmem:[#allocation4 + $0x18] sm:$0xff]
    %v97 = vld [vmem:[#allocation4 + $0x20] sm:$0xff]
    %v98 = vld [vmem:[#allocation4 + $0x28] sm:$0xff]
    %v99 = vld [vmem:[#allocation4 + $0x30] sm:$0xff]
    %v100 = vld [vmem:[#allocation4 + $0x38] sm:$0xff]
    %v102 = vlaneseq
    %v103 = vshrl.u32 %v102, 7
    %v104 = vsub.s32 0, %v103
    %v105 = vrot.slane %v92, %v104
    %vm107 = vcmask 261120
    %v109 = vsel %vm107, %v93, 0
    %v112 = vsel %vm107, %v94, 0
    %v115 = vsel %vm107, %v95, 0
    %v118 = vsel %vm107, %v96, 0
    %v121 = vsel %vm107, %v97, 0
    %v124 = vsel %vm107, %v98, 0
    %v127 = vsel %vm107, %v99, 0
    %v130 = vsel %vm107, %v100, 0
    %132 = vmatprep.subr.mxu0 0.0
    %133 = vmatpush1.msra.mxu0 0.0
    %134 = vmatprep.subr.mxu0 0.0
    %135 = vmatpush1.msra.mxu0 0.0
    %136 = vmatprep.subr.mxu0 0.0
    %137 = vmatpush1.msra.mxu0 0.0
    %138 = vmatprep.subr.mxu0 0.0
    %139 = vmatpush1.msra.mxu0 0.0
    %140 = vmatprep.subr.mxu0 0.0
    %141 = vmatpush1.msra.mxu0 0.0
    %142 = vmatprep.subr.mxu0 0.0
    %143 = vmatpush1.msra.mxu0 0.0
    %144 = vmatprep.subr.mxu0 0.0
    %145 = vmatpush1.msra.mxu0 0.0
    %146 = vmatprep.subr.mxu0 0.0
    %147 = vmatpush1.msra.mxu0 0.0
    %148 = vmatprep.subr.mxu0 0.0
    %149 = vmatpush1.msra.mxu0 0.0
    %150 = vmatprep.subr.mxu0 0.0
    %151 = vmatpush1.msra.mxu0 0.0
    %152 = vmatprep.subr.mxu0 0.0
    %153 = vmatpush1.msra.mxu0 0.0
    %154 = vmatprep.subr.mxu0 0.0
    %155 = vmatpush1.msra.mxu0 0.0
    %156 = vmatprep.subr.mxu0 0.0
    %157 = vmatpush1.msra.mxu0 %v87
    %158 = vmatprep.subr.mxu0 0.0
    %159 = vmatpush1.msra.mxu0 %v86
    %160 = vmatprep.subr.mxu0 0.0
    %161 = vmatpush1.msra.mxu0 %v85
    %162 = vmatprep.subr.mxu0 0.0
    %163 = vmatpush1.msra.mxu0 %v84
    %164 = vmatprep.subr.mxu0 0.0
    %165 = vmatpush2.msra.mxu0 0.0
    %166 = vmatprep.subr.mxu0 0.0
    %167 = vmatpush2.msra.mxu0 0.0
    %168 = vmatprep.subr.mxu0 0.0
    %169 = vmatpush2.msra.mxu0 0.0
    %170 = vmatprep.subr.mxu0 0.0
    %171 = vmatpush2.msra.mxu0 0.0
    %172 = vmatprep.subr.mxu0 0.0
    %173 = vmatpush2.msra.mxu0 0.0
    %174 = vmatprep.subr.mxu0 0.0
    %175 = vmatpush2.msra.mxu0 0.0
    %176 = vmatprep.subr.mxu0 0.0
    %177 = vmatpush2.msra.mxu0 0.0
    %178 = vmatprep.subr.mxu0 0.0
    %179 = vmatpush2.msra.mxu0 0.0
    %180 = vmatprep.subr.mxu0 0.0
    %181 = vmatpush2.msra.mxu0 0.0
    %182 = vmatprep.subr.mxu0 0.0
    %183 = vmatpush2.msra.mxu0 0.0
    %184 = vmatprep.subr.mxu0 0.0
    %185 = vmatpush2.msra.mxu0 0.0
    %186 = vmatprep.subr.mxu0 0.0
    %187 = vmatpush2.msra.mxu0 0.0
    %188 = vmatprep.subr.mxu0 0.0
    %189 = vmatpush2.msra.mxu0 0.0
    %190 = vmatprep.subr.mxu0 0.0
    %191 = vmatpush2.msra.mxu0 0.0
    %192 = vmatprep.subr.mxu0 0.0
    %193 = vmatpush2.msra.mxu0 0.0
    %194 = vmatprep.subr.mxu0 0.0
    %195 = vmatpush2.msra.mxu0 0.0
    %196 = vmatprep.mubr.f32.mxu0 0.0
    %197 = vmatmul.mubr.f32.gmra.mxu0 %v109
    %v198 = vpop.f32.mrf.mxu0
    %v199 = vadd.f32 %v105, %v198
    %v200 = vpop.f32.mrf.mxu0
    %201 = vmatprep.mubr.f32.mxu0 0.0
    %202 = vmatmul.mubr.f32.gmra.mxu0 %v112
    %v203 = vpop.f32.mrf.mxu0
    %v204 = vadd.f32 %v105, %v203
    %v205 = vpop.f32.mrf.mxu0
    %206 = vmatprep.mubr.f32.mxu0 0.0
    %207 = vmatmul.mubr.f32.gmra.mxu0 %v115
    %v208 = vpop.f32.mrf.mxu0
    %v209 = vadd.f32 %v105, %v208
    %v210 = vpop.f32.mrf.mxu0
    %211 = vmatprep.mubr.f32.mxu0 0.0
    %212 = vmatmul.mubr.f32.gmra.mxu0 %v118
    %v213 = vpop.f32.mrf.mxu0
    %v214 = vadd.f32 %v105, %v213
    %v215 = vpop.f32.mrf.mxu0
    %216 = vmatprep.mubr.f32.mxu0 0.0
    %217 = vmatmul.mubr.f32.gmra.mxu0 %v121
    %v218 = vpop.f32.mrf.mxu0
    %v219 = vadd.f32 %v105, %v218
    %v220 = vpop.f32.mrf.mxu0
    %221 = vmatprep.mubr.f32.mxu0 0.0
    %222 = vmatmul.mubr.f32.gmra.mxu0 %v124
    %v223 = vpop.f32.mrf.mxu0
    %v224 = vadd.f32 %v105, %v223
    %v225 = vpop.f32.mrf.mxu0
    %226 = vmatprep.mubr.f32.mxu0 0.0
    %227 = vmatmul.mubr.f32.gmra.mxu0 %v127
    %v228 = vpop.f32.mrf.mxu0
    %v229 = vadd.f32 %v105, %v228
    %v230 = vpop.f32.mrf.mxu0
    %231 = vmatprep.mubr.f32.mxu0 0.0
    %232 = vmatmul.mubr.f32.gmra.mxu0 %v130
    %v233 = vpop.f32.mrf.mxu0
    %v234 = vadd.f32 %v105, %v233
    %v235 = vpop.f32.mrf.mxu0
    %236 = vdwg.mxu0
    %237 = vst [vmem:[#allocation3] sm:$0xff] %v199
    %238 = vst [vmem:[#allocation3 + $0x8] sm:$0xff] %v204
    %239 = vst [vmem:[#allocation3 + $0x10] sm:$0xff] %v209
    %240 = vst [vmem:[#allocation3 + $0x18] sm:$0xff] %v214
    %241 = vst [vmem:[#allocation3 + $0x20] sm:$0xff] %v219
    %242 = vst [vmem:[#allocation3 + $0x28] sm:$0xff] %v224
    %243 = vst [vmem:[#allocation3 + $0x30] sm:$0xff] %v229
    %244 = vst [vmem:[#allocation3 + $0x38] sm:$0xff] %v234
    %v245 = vld [vmem:[#allocation3] sm:$0xff]
    %v247 = vsel %vm107, 0.0, 0
    %249 = vmatprep.subr.mxu0 0.0
    %250 = vmatpush1.msra.mxu0 0.0
    %251 = vmatprep.subr.mxu0 0.0
    %252 = vmatpush1.msra.mxu0 0.0
    %253 = vmatprep.subr.mxu0 0.0
    %254 = vmatpush1.msra.mxu0 0.0
    %255 = vmatprep.subr.mxu0 0.0
    %256 = vmatpush1.msra.mxu0 0.0
    %257 = vmatprep.subr.mxu0 0.0
    %258 = vmatpush1.msra.mxu0 0.0
    %259 = vmatprep.subr.mxu0 0.0
    %260 = vmatpush1.msra.mxu0 0.0
    %261 = vmatprep.subr.mxu0 0.0
    %262 = vmatpush1.msra.mxu0 0.0
    %263 = vmatprep.subr.mxu0 0.0
    %264 = vmatpush1.msra.mxu0 0.0
    %265 = vmatprep.subr.mxu0 0.0
    %266 = vmatpush1.msra.mxu0 0.0
    %267 = vmatprep.subr.mxu0 0.0
    %268 = vmatpush1.msra.mxu0 0.0
    %269 = vmatprep.subr.mxu0 0.0
    %270 = vmatpush1.msra.mxu0 0.0
    %271 = vmatprep.subr.mxu0 0.0
    %272 = vmatpush1.msra.mxu0 0.0
    %273 = vmatprep.subr.mxu0 0.0
    %274 = vmatpush1.msra.mxu0 %v91
    %275 = vmatprep.subr.mxu0 0.0
    %276 = vmatpush1.msra.mxu0 %v90
    %277 = vmatprep.subr.mxu0 0.0
    %278 = vmatpush1.msra.mxu0 %v89
    %279 = vmatprep.subr.mxu0 0.0
    %280 = vmatpush1.msra.mxu0 %v88
    %281 = vmatprep.subr.mxu0 0.0
    %282 = vmatpush2.msra.mxu0 0.0
    %283 = vmatprep.subr.mxu0 0.0
    %284 = vmatpush2.msra.mxu0 0.0
    %285 = vmatprep.subr.mxu0 0.0
    %286 = vmatpush2.msra.mxu0 0.0
    %287 = vmatprep.subr.mxu0 0.0
    %288 = vmatpush2.msra.mxu0 0.0
    %289 = vmatprep.subr.mxu0 0.0
    %290 = vmatpush2.msra.mxu0 0.0
    %291 = vmatprep.subr.mxu0 0.0
    %292 = vmatpush2.msra.mxu0 0.0
    %293 = vmatprep.subr.mxu0 0.0
    %294 = vmatpush2.msra.mxu0 0.0
    %295 = vmatprep.subr.mxu0 0.0
    %296 = vmatpush2.msra.mxu0 0.0
    %297 = vmatprep.subr.mxu0 0.0
    %298 = vmatpush2.msra.mxu0 0.0
    %299 = vmatprep.subr.mxu0 0.0
    %300 = vmatpush2.msra.mxu0 0.0
    %301 = vmatprep.subr.mxu0 0.0
    %302 = vmatpush2.msra.mxu0 0.0
    %303 = vmatprep.subr.mxu0 0.0
    %304 = vmatpush2.msra.mxu0 0.0
    %305 = vmatprep.subr.mxu0 0.0
    %306 = vmatpush2.msra.mxu0 0.0
    %307 = vmatprep.subr.mxu0 0.0
    %308 = vmatpush2.msra.mxu0 0.0
    %309 = vmatprep.subr.mxu0 0.0
    %310 = vmatpush2.msra.mxu0 0.0
    %311 = vmatprep.subr.mxu0 0.0
    %312 = vmatpush2.msra.mxu0 0.0
    %313 = vmatprep.mubr.f32.mxu0 0.0
    %314 = vmatmul.mubr.f32.gmra.mxu0 %v247
    %v315 = vpop.f32.mrf.mxu0
    %v316 = vadd.f32 0.0, %v315
    %v317 = vpop.f32.mrf.mxu0
    %318 = vdwg.mxu0
    %v319 = vadd.f32 %v245, %v316
    %v320 = vtanh.pop %v319
    %v321 = vxor.u32 %v319, 2147483648
    %v322 = vmul.f32 %v321, 1.442695
    %v323 = vpow.pop %v322
    %v324 = vadd.f32 %v323, 1.0
    %v325 = vrcp.pop %v324
    %v326 = vmul.f32 1.0, %v325
    %v327 = vsel %vm83, %v320, %v326
    %v328 = vmul.f32 %v327, 0.0
    %330 = vrot.lane.b32.xlu0 %v327, 64
    %v331 = vpop.permute.xlu0 %330
    %v333 = vmul.f32 %v327, %v331
    %335 = vrot.lane.b32.xlu0 %v333, 32
    %v336 = vpop.permute.xlu0 %335
    %v338 = vadd.f32 %v328, %v336
    %v339 = vtanh.pop %v338
    %341 = vrot.lane.b32.xlu0 %v339, 64
    %v342 = vpop.permute.xlu0 %341
    %v344 = vmul.f32 %v327, %v342
    %346 = vrot.lane.b32.xlu0 %v344, 32
    %v347 = vpop.permute.xlu0 %346
    %349 = vst.msk [vmem:[#allocation2] sm:$0xff] %vm107, %v347
    %s350 = scalar_lea.vmem [#allocation3], 8
    %v351 = vld [vmem:[%s350] sm:$0xff]
    %v352 = vsel %vm107, %v347, 0
    %354 = vmatprep.subr.mxu0 0.0
    %355 = vmatpush1.msra.mxu0 0.0
    %356 = vmatprep.subr.mxu0 0.0
    %357 = vmatpush1.msra.mxu0 0.0
    %358 = vmatprep.subr.mxu0 0.0
    %359 = vmatpush1.msra.mxu0 0.0
    %360 = vmatprep.subr.mxu0 0.0
    %361 = vmatpush1.msra.mxu0 0.0
    %362 = vmatprep.subr.mxu0 0.0
    %363 = vmatpush1.msra.mxu0 0.0
    %364 = vmatprep.subr.mxu0 0.0
    %365 = vmatpush1.msra.mxu0 0.0
    %366 = vmatprep.subr.mxu0 0.0
    %367 = vmatpush1.msra.mxu0 0.0
    %368 = vmatprep.subr.mxu0 0.0
    %369 = vmatpush1.msra.mxu0 0.0
    %370 = vmatprep.subr.mxu0 0.0
    %371 = vmatpush1.msra.mxu0 0.0
    %372 = vmatprep.subr.mxu0 0.0
    %373 = vmatpush1.msra.mxu0 0.0
    %374 = vmatprep.subr.mxu0 0.0
    %375 = vmatpush1.msra.mxu0 0.0
    %376 = vmatprep.subr.mxu0 0.0
    %377 = vmatpush1.msra.mxu0 0.0
    %378 = vmatprep.subr.mxu0 0.0
    %379 = vmatpush1.msra.mxu0 %v91
    %380 = vmatprep.subr.mxu0 0.0
    %381 = vmatpush1.msra.mxu0 %v90
    %382 = vmatprep.subr.mxu0 0.0
    %383 = vmatpush1.msra.mxu0 %v89
    %384 = vmatprep.subr.mxu0 0.0
    %385 = vmatpush1.msra.mxu0 %v88
    %386 = vmatprep.subr.mxu0 0.0
    %387 = vmatpush2.msra.mxu0 0.0
    %388 = vmatprep.subr.mxu0 0.0
    %389 = vmatpush2.msra.mxu0 0.0
    %390 = vmatprep.subr.mxu0 0.0
    %391 = vmatpush2.msra.mxu0 0.0
    %392 = vmatprep.subr.mxu0 0.0
    %393 = vmatpush2.msra.mxu0 0.0
    %394 = vmatprep.subr.mxu0 0.0
    %395 = vmatpush2.msra.mxu0 0.0
    %396 = vmatprep.subr.mxu0 0.0
    %397 = vmatpush2.msra.mxu0 0.0
    %398 = vmatprep.subr.mxu0 0.0
    %399 = vmatpush2.msra.mxu0 0.0
    %400 = vmatprep.subr.mxu0 0.0
    %401 = vmatpush2.msra.mxu0 0.0
    %402 = vmatprep.subr.mxu0 0.0
    %403 = vmatpush2.msra.mxu0 0.0
    %404 = vmatprep.subr.mxu0 0.0
    %405 = vmatpush2.msra.mxu0 0.0
    %406 = vmatprep.subr.mxu0 0.0
    %407 = vmatpush2.msra.mxu0 0.0
    %408 = vmatprep.subr.mxu0 0.0
    %409 = vmatpush2.msra.mxu0 0.0
    %410 = vmatprep.subr.mxu0 0.0
    %411 = vmatpush2.msra.mxu0 0.0
    %412 = vmatprep.subr.mxu0 0.0
    %413 = vmatpush2.msra.mxu0 0.0
    %414 = vmatprep.subr.mxu0 0.0
    %415 = vmatpush2.msra.mxu0 0.0
    %416 = vmatprep.subr.mxu0 0.0
    %417 = vmatpush2.msra.mxu0 0.0
    %418 = vmatprep.mubr.f32.mxu0 0.0
    %419 = vmatmul.mubr.f32.gmra.mxu0 %v352
    %v420 = vpop.f32.mrf.mxu0
    %v421 = vadd.f32 0.0, %v420
    %v422 = vpop.f32.mrf.mxu0
    %423 = vdwg.mxu0
    %v424 = vadd.f32 %v351, %v421
    %v425 = vtanh.pop %v424
    %v426 = vxor.u32 %v424, 2147483648
    %v427 = vmul.f32 %v426, 1.442695
    %v428 = vpow.pop %v427
    %v429 = vadd.f32 %v428, 1.0
    %v430 = vrcp.pop %v429
    %v431 = vmul.f32 1.0, %v430
    %v432 = vsel %vm83, %v425, %v431
    %v433 = vmul.f32 %v432, %v338
    %435 = vrot.lane.b32.xlu0 %v432, 64
    %v436 = vpop.permute.xlu0 %435
    %v438 = vmul.f32 %v432, %v436
    %440 = vrot.lane.b32.xlu0 %v438, 32
    %v441 = vpop.permute.xlu0 %440
    %v443 = vadd.f32 %v433, %v441
    %v444 = vtanh.pop %v443
    %446 = vrot.lane.b32.xlu0 %v444, 64
    %v447 = vpop.permute.xlu0 %446
    %v449 = vmul.f32 %v432, %v447
    %451 = vrot.lane.b32.xlu0 %v449, 32
    %v452 = vpop.permute.xlu0 %451
    %s454 = scalar_lea.vmem [#allocation2], 8
    %455 = vst.msk [vmem:[%s454] sm:$0xff] %vm107, %v452
    %s456 = scalar_lea.vmem [#allocation3], 16
    %v457 = vld [vmem:[%s456] sm:$0xff]
    %v458 = vsel %vm107, %v452, 0
    %460 = vmatprep.subr.mxu0 0.0
    %461 = vmatpush1.msra.mxu0 0.0
    %462 = vmatprep.subr.mxu0 0.0
    %463 = vmatpush1.msra.mxu0 0.0
    %464 = vmatprep.subr.mxu0 0.0
    %465 = vmatpush1.msra.mxu0 0.0
    %466 = vmatprep.subr.mxu0 0.0
    %467 = vmatpush1.msra.mxu0 0.0
    %468 = vmatprep.subr.mxu0 0.0
    %469 = vmatpush1.msra.mxu0 0.0
    %470 = vmatprep.subr.mxu0 0.0
    %471 = vmatpush1.msra.mxu0 0.0
    %472 = vmatprep.subr.mxu0 0.0
    %473 = vmatpush1.msra.mxu0 0.0
    %474 = vmatprep.subr.mxu0 0.0
    %475 = vmatpush1.msra.mxu0 0.0
    %476 = vmatprep.subr.mxu0 0.0
    %477 = vmatpush1.msra.mxu0 0.0
    %478 = vmatprep.subr.mxu0 0.0
    %479 = vmatpush1.msra.mxu0 0.0
    %480 = vmatprep.subr.mxu0 0.0
    %481 = vmatpush1.msra.mxu0 0.0
    %482 = vmatprep.subr.mxu0 0.0
    %483 = vmatpush1.msra.mxu0 0.0
    %484 = vmatprep.subr.mxu0 0.0
    %485 = vmatpush1.msra.mxu0 %v91
    %486 = vmatprep.subr.mxu0 0.0
    %487 = vmatpush1.msra.mxu0 %v90
    %488 = vmatprep.subr.mxu0 0.0
    %489 = vmatpush1.msra.mxu0 %v89
    %490 = vmatprep.subr.mxu0 0.0
    %491 = vmatpush1.msra.mxu0 %v88
    %492 = vmatprep.subr.mxu0 0.0
    %493 = vmatpush2.msra.mxu0 0.0
    %494 = vmatprep.subr.mxu0 0.0
    %495 = vmatpush2.msra.mxu0 0.0
    %496 = vmatprep.subr.mxu0 0.0
    %497 = vmatpush2.msra.mxu0 0.0
    %498 = vmatprep.subr.mxu0 0.0
    %499 = vmatpush2.msra.mxu0 0.0
    %500 = vmatprep.subr.mxu0 0.0
    %501 = vmatpush2.msra.mxu0 0.0
    %502 = vmatprep.subr.mxu0 0.0
    %503 = vmatpush2.msra.mxu0 0.0
    %504 = vmatprep.subr.mxu0 0.0
    %505 = vmatpush2.msra.mxu0 0.0
    %506 = vmatprep.subr.mxu0 0.0
    %507 = vmatpush2.msra.mxu0 0.0
    %508 = vmatprep.subr.mxu0 0.0
    %509 = vmatpush2.msra.mxu0 0.0
    %510 = vmatprep.subr.mxu0 0.0
    %511 = vmatpush2.msra.mxu0 0.0
    %512 = vmatprep.subr.mxu0 0.0
    %513 = vmatpush2.msra.mxu0 0.0
    %514 = vmatprep.subr.mxu0 0.0
    %515 = vmatpush2.msra.mxu0 0.0
    %516 = vmatprep.subr.mxu0 0.0
    %517 = vmatpush2.msra.mxu0 0.0
    %518 = vmatprep.subr.mxu0 0.0
    %519 = vmatpush2.msra.mxu0 0.0
    %520 = vmatprep.subr.mxu0 0.0
    %521 = vmatpush2.msra.mxu0 0.0
    %522 = vmatprep.subr.mxu0 0.0
    %523 = vmatpush2.msra.mxu0 0.0
    %524 = vmatprep.mubr.f32.mxu0 0.0
    %525 = vmatmul.mubr.f32.gmra.mxu0 %v458
    %v526 = vpop.f32.mrf.mxu0
    %v527 = vadd.f32 0.0, %v526
    %v528 = vpop.f32.mrf.mxu0
    %529 = vdwg.mxu0
    %v530 = vadd.f32 %v457, %v527
    %v531 = vtanh.pop %v530
    %v532 = vxor.u32 %v530, 2147483648
    %v533 = vmul.f32 %v532, 1.442695
    %v534 = vpow.pop %v533
    %v535 = vadd.f32 %v534, 1.0
    %v536 = vrcp.pop %v535
    %v537 = vmul.f32 1.0, %v536
    %v538 = vsel %vm83, %v531, %v537
    %v539 = vmul.f32 %v538, %v443
    %541 = vrot.lane.b32.xlu0 %v538, 64
    %v542 = vpop.permute.xlu0 %541
    %v544 = vmul.f32 %v538, %v542
    %546 = vrot.lane.b32.xlu0 %v544, 32
    %v547 = vpop.permute.xlu0 %546
    %v549 = vadd.f32 %v539, %v547
    %v550 = vtanh.pop %v549
    %552 = vrot.lane.b32.xlu0 %v550, 64
    %v553 = vpop.permute.xlu0 %552
    %v555 = vmul.f32 %v538, %v553
    %557 = vrot.lane.b32.xlu0 %v555, 32
    %v558 = vpop.permute.xlu0 %557
    %s560 = scalar_lea.vmem [#allocation2], 16
    %561 = vst.msk [vmem:[%s560] sm:$0xff] %vm107, %v558
    %s562 = scalar_lea.vmem [#allocation3], 24
    %v563 = vld [vmem:[%s562] sm:$0xff]
    %v564 = vsel %vm107, %v558, 0
    %566 = vmatprep.subr.mxu0 0.0
    %567 = vmatpush1.msra.mxu0 0.0
    %568 = vmatprep.subr.mxu0 0.0
    %569 = vmatpush1.msra.mxu0 0.0
    %570 = vmatprep.subr.mxu0 0.0
    %571 = vmatpush1.msra.mxu0 0.0
    %572 = vmatprep.subr.mxu0 0.0
    %573 = vmatpush1.msra.mxu0 0.0
    %574 = vmatprep.subr.mxu0 0.0
    %575 = vmatpush1.msra.mxu0 0.0
    %576 = vmatprep.subr.mxu0 0.0
    %577 = vmatpush1.msra.mxu0 0.0
    %578 = vmatprep.subr.mxu0 0.0
    %579 = vmatpush1.msra.mxu0 0.0
    %580 = vmatprep.subr.mxu0 0.0
    %581 = vmatpush1.msra.mxu0 0.0
    %582 = vmatprep.subr.mxu0 0.0
    %583 = vmatpush1.msra.mxu0 0.0
    %584 = vmatprep.subr.mxu0 0.0
    %585 = vmatpush1.msra.mxu0 0.0
    %586 = vmatprep.subr.mxu0 0.0
    %587 = vmatpush1.msra.mxu0 0.0
    %588 = vmatprep.subr.mxu0 0.0
    %589 = vmatpush1.msra.mxu0 0.0
    %590 = vmatprep.subr.mxu0 0.0
    %591 = vmatpush1.msra.mxu0 %v91
    %592 = vmatprep.subr.mxu0 0.0
    %593 = vmatpush1.msra.mxu0 %v90
    %594 = vmatprep.subr.mxu0 0.0
    %595 = vmatpush1.msra.mxu0 %v89
    %596 = vmatprep.subr.mxu0 0.0
    %597 = vmatpush1.msra.mxu0 %v88
    %598 = vmatprep.subr.mxu0 0.0
    %599 = vmatpush2.msra.mxu0 0.0
    %600 = vmatprep.subr.mxu0 0.0
    %601 = vmatpush2.msra.mxu0 0.0
    %602 = vmatprep.subr.mxu0 0.0
    %603 = vmatpush2.msra.mxu0 0.0
    %604 = vmatprep.subr.mxu0 0.0
    %605 = vmatpush2.msra.mxu0 0.0
    %606 = vmatprep.subr.mxu0 0.0
    %607 = vmatpush2.msra.mxu0 0.0
    %608 = vmatprep.subr.mxu0 0.0
    %609 = vmatpush2.msra.mxu0 0.0
    %610 = vmatprep.subr.mxu0 0.0
    %611 = vmatpush2.msra.mxu0 0.0
    %612 = vmatprep.subr.mxu0 0.0
    %613 = vmatpush2.msra.mxu0 0.0
    %614 = vmatprep.subr.mxu0 0.0
    %615 = vmatpush2.msra.mxu0 0.0
    %616 = vmatprep.subr.mxu0 0.0
    %617 = vmatpush2.msra.mxu0 0.0
    %618 = vmatprep.subr.mxu0 0.0
    %619 = vmatpush2.msra.mxu0 0.0
    %620 = vmatprep.subr.mxu0 0.0
    %621 = vmatpush2.msra.mxu0 0.0
    %622 = vmatprep.subr.mxu0 0.0
    %623 = vmatpush2.msra.mxu0 0.0
    %624 = vmatprep.subr.mxu0 0.0
    %625 = vmatpush2.msra.mxu0 0.0
    %626 = vmatprep.subr.mxu0 0.0
    %627 = vmatpush2.msra.mxu0 0.0
    %628 = vmatprep.subr.mxu0 0.0
    %629 = vmatpush2.msra.mxu0 0.0
    %630 = vmatprep.mubr.f32.mxu0 0.0
    %631 = vmatmul.mubr.f32.gmra.mxu0 %v564
    %v632 = vpop.f32.mrf.mxu0
    %v633 = vadd.f32 0.0, %v632
    %v634 = vpop.f32.mrf.mxu0
    %635 = vdwg.mxu0
    %v636 = vadd.f32 %v563, %v633
    %v637 = vtanh.pop %v636
    %v638 = vxor.u32 %v636, 2147483648
    %v639 = vmul.f32 %v638, 1.442695
    %v640 = vpow.pop %v639
    %v641 = vadd.f32 %v640, 1.0
    %v642 = vrcp.pop %v641
    %v643 = vmul.f32 1.0, %v642
    %v644 = vsel %vm83, %v637, %v643
    %v645 = vmul.f32 %v644, %v549
    %647 = vrot.lane.b32.xlu0 %v644, 64
    %v648 = vpop.permute.xlu0 %647
    %v650 = vmul.f32 %v644, %v648
    %652 = vrot.lane.b32.xlu0 %v650, 32
    %v653 = vpop.permute.xlu0 %652
    %v655 = vadd.f32 %v645, %v653
    %v656 = vtanh.pop %v655
    %658 = vrot.lane.b32.xlu0 %v656, 64
    %v659 = vpop.permute.xlu0 %658
    %v661 = vmul.f32 %v644, %v659
    %663 = vrot.lane.b32.xlu0 %v661, 32
    %v664 = vpop.permute.xlu0 %663
    %s666 = scalar_lea.vmem [#allocation2], 24
    %667 = vst.msk [vmem:[%s666] sm:$0xff] %vm107, %v664
    %s668 = scalar_lea.vmem [#allocation3], 32
    %v669 = vld [vmem:[%s668] sm:$0xff]
    %v670 = vsel %vm107, %v664, 0
    %672 = vmatprep.subr.mxu0 0.0
    %673 = vmatpush1.msra.mxu0 0.0
    %674 = vmatprep.subr.mxu0 0.0
    %675 = vmatpush1.msra.mxu0 0.0
    %676 = vmatprep.subr.mxu0 0.0
    %677 = vmatpush1.msra.mxu0 0.0
    %678 = vmatprep.subr.mxu0 0.0
    %679 = vmatpush1.msra.mxu0 0.0
    %680 = vmatprep.subr.mxu0 0.0
    %681 = vmatpush1.msra.mxu0 0.0
    %682 = vmatprep.subr.mxu0 0.0
    %683 = vmatpush1.msra.mxu0 0.0
    %684 = vmatprep.subr.mxu0 0.0
    %685 = vmatpush1.msra.mxu0 0.0
    %686 = vmatprep.subr.mxu0 0.0
    %687 = vmatpush1.msra.mxu0 0.0
    %688 = vmatprep.subr.mxu0 0.0
    %689 = vmatpush1.msra.mxu0 0.0
    %690 = vmatprep.subr.mxu0 0.0
    %691 = vmatpush1.msra.mxu0 0.0
    %692 = vmatprep.subr.mxu0 0.0
    %693 = vmatpush1.msra.mxu0 0.0
    %694 = vmatprep.subr.mxu0 0.0
    %695 = vmatpush1.msra.mxu0 0.0
    %696 = vmatprep.subr.mxu0 0.0
    %697 = vmatpush1.msra.mxu0 %v91
    %698 = vmatprep.subr.mxu0 0.0
    %699 = vmatpush1.msra.mxu0 %v90
    %700 = vmatprep.subr.mxu0 0.0
    %701 = vmatpush1.msra.mxu0 %v89
    %702 = vmatprep.subr.mxu0 0.0
    %703 = vmatpush1.msra.mxu0 %v88
    %704 = vmatprep.subr.mxu0 0.0
    %705 = vmatpush2.msra.mxu0 0.0
    %706 = vmatprep.subr.mxu0 0.0
    %707 = vmatpush2.msra.mxu0 0.0
    %708 = vmatprep.subr.mxu0 0.0
    %709 = vmatpush2.msra.mxu0 0.0
    %710 = vmatprep.subr.mxu0 0.0
    %711 = vmatpush2.msra.mxu0 0.0
    %712 = vmatprep.subr.mxu0 0.0
    %713 = vmatpush2.msra.mxu0 0.0
    %714 = vmatprep.subr.mxu0 0.0
    %715 = vmatpush2.msra.mxu0 0.0
    %716 = vmatprep.subr.mxu0 0.0
    %717 = vmatpush2.msra.mxu0 0.0
    %718 = vmatprep.subr.mxu0 0.0
    %719 = vmatpush2.msra.mxu0 0.0
    %720 = vmatprep.subr.mxu0 0.0
    %721 = vmatpush2.msra.mxu0 0.0
    %722 = vmatprep.subr.mxu0 0.0
    %723 = vmatpush2.msra.mxu0 0.0
    %724 = vmatprep.subr.mxu0 0.0
    %725 = vmatpush2.msra.mxu0 0.0
    %726 = vmatprep.subr.mxu0 0.0
    %727 = vmatpush2.msra.mxu0 0.0
    %728 = vmatprep.subr.mxu0 0.0
    %729 = vmatpush2.msra.mxu0 0.0
    %730 = vmatprep.subr.mxu0 0.0
    %731 = vmatpush2.msra.mxu0 0.0
    %732 = vmatprep.subr.mxu0 0.0
    %733 = vmatpush2.msra.mxu0 0.0
    %734 = vmatprep.subr.mxu0 0.0
    %735 = vmatpush2.msra.mxu0 0.0
    %736 = vmatprep.mubr.f32.mxu0 0.0
    %737 = vmatmul.mubr.f32.gmra.mxu0 %v670
    %v738 = vpop.f32.mrf.mxu0
    %v739 = vadd.f32 0.0, %v738
    %v740 = vpop.f32.mrf.mxu0
    %741 = vdwg.mxu0
    %v742 = vadd.f32 %v669, %v739
    %v743 = vtanh.pop %v742
    %v744 = vxor.u32 %v742, 2147483648
    %v745 = vmul.f32 %v744, 1.442695
    %v746 = vpow.pop %v745
    %v747 = vadd.f32 %v746, 1.0
    %v748 = vrcp.pop %v747
    %v749 = vmul.f32 1.0, %v748
    %v750 = vsel %vm83, %v743, %v749
    %v751 = vmul.f32 %v750, %v655
    %753 = vrot.lane.b32.xlu0 %v750, 64
    %v754 = vpop.permute.xlu0 %753
    %v756 = vmul.f32 %v750, %v754
    %758 = vrot.lane.b32.xlu0 %v756, 32
    %v759 = vpop.permute.xlu0 %758
    %v761 = vadd.f32 %v751, %v759
    %v762 = vtanh.pop %v761
    %764 = vrot.lane.b32.xlu0 %v762, 64
    %v765 = vpop.permute.xlu0 %764
    %v767 = vmul.f32 %v750, %v765
    %769 = vrot.lane.b32.xlu0 %v767, 32
    %v770 = vpop.permute.xlu0 %769
    %s772 = scalar_lea.vmem [#allocation2], 32
    %773 = vst.msk [vmem:[%s772] sm:$0xff] %vm107, %v770
    %s774 = scalar_lea.vmem [#allocation3], 40
    %v775 = vld [vmem:[%s774] sm:$0xff]
    %v776 = vsel %vm107, %v770, 0
    %778 = vmatprep.subr.mxu0 0.0
    %779 = vmatpush1.msra.mxu0 0.0
    %780 = vmatprep.subr.mxu0 0.0
    %781 = vmatpush1.msra.mxu0 0.0
    %782 = vmatprep.subr.mxu0 0.0
    %783 = vmatpush1.msra.mxu0 0.0
    %784 = vmatprep.subr.mxu0 0.0
    %785 = vmatpush1.msra.mxu0 0.0
    %786 = vmatprep.subr.mxu0 0.0
    %787 = vmatpush1.msra.mxu0 0.0
    %788 = vmatprep.subr.mxu0 0.0
    %789 = vmatpush1.msra.mxu0 0.0
    %790 = vmatprep.subr.mxu0 0.0
    %791 = vmatpush1.msra.mxu0 0.0
    %792 = vmatprep.subr.mxu0 0.0
    %793 = vmatpush1.msra.mxu0 0.0
    %794 = vmatprep.subr.mxu0 0.0
    %795 = vmatpush1.msra.mxu0 0.0
    %796 = vmatprep.subr.mxu0 0.0
    %797 = vmatpush1.msra.mxu0 0.0
    %798 = vmatprep.subr.mxu0 0.0
    %799 = vmatpush1.msra.mxu0 0.0
    %800 = vmatprep.subr.mxu0 0.0
    %801 = vmatpush1.msra.mxu0 0.0
    %802 = vmatprep.subr.mxu0 0.0
    %803 = vmatpush1.msra.mxu0 %v91
    %804 = vmatprep.subr.mxu0 0.0
    %805 = vmatpush1.msra.mxu0 %v90
    %806 = vmatprep.subr.mxu0 0.0
    %807 = vmatpush1.msra.mxu0 %v89
    %808 = vmatprep.subr.mxu0 0.0
    %809 = vmatpush1.msra.mxu0 %v88
    %810 = vmatprep.subr.mxu0 0.0
    %811 = vmatpush2.msra.mxu0 0.0
    %812 = vmatprep.subr.mxu0 0.0
    %813 = vmatpush2.msra.mxu0 0.0
    %814 = vmatprep.subr.mxu0 0.0
    %815 = vmatpush2.msra.mxu0 0.0
    %816 = vmatprep.subr.mxu0 0.0
    %817 = vmatpush2.msra.mxu0 0.0
    %818 = vmatprep.subr.mxu0 0.0
    %819 = vmatpush2.msra.mxu0 0.0
    %820 = vmatprep.subr.mxu0 0.0
    %821 = vmatpush2.msra.mxu0 0.0
    %822 = vmatprep.subr.mxu0 0.0
    %823 = vmatpush2.msra.mxu0 0.0
    %824 = vmatprep.subr.mxu0 0.0
    %825 = vmatpush2.msra.mxu0 0.0
    %826 = vmatprep.subr.mxu0 0.0
    %827 = vmatpush2.msra.mxu0 0.0
    %828 = vmatprep.subr.mxu0 0.0
    %829 = vmatpush2.msra.mxu0 0.0
    %830 = vmatprep.subr.mxu0 0.0
    %831 = vmatpush2.msra.mxu0 0.0
    %832 = vmatprep.subr.mxu0 0.0
    %833 = vmatpush2.msra.mxu0 0.0
    %834 = vmatprep.subr.mxu0 0.0
    %835 = vmatpush2.msra.mxu0 0.0
    %836 = vmatprep.subr.mxu0 0.0
    %837 = vmatpush2.msra.mxu0 0.0
    %838 = vmatprep.subr.mxu0 0.0
    %839 = vmatpush2.msra.mxu0 0.0
    %840 = vmatprep.subr.mxu0 0.0
    %841 = vmatpush2.msra.mxu0 0.0
    %842 = vmatprep.mubr.f32.mxu0 0.0
    %843 = vmatmul.mubr.f32.gmra.mxu0 %v776
    %v844 = vpop.f32.mrf.mxu0
    %v845 = vadd.f32 0.0, %v844
    %v846 = vpop.f32.mrf.mxu0
    %847 = vdwg.mxu0
    %v848 = vadd.f32 %v775, %v845
    %v849 = vtanh.pop %v848
    %v850 = vxor.u32 %v848, 2147483648
    %v851 = vmul.f32 %v850, 1.442695
    %v852 = vpow.pop %v851
    %v853 = vadd.f32 %v852, 1.0
    %v854 = vrcp.pop %v853
    %v855 = vmul.f32 1.0, %v854
    %v856 = vsel %vm83, %v849, %v855
    %v857 = vmul.f32 %v856, %v761
    %859 = vrot.lane.b32.xlu0 %v856, 64
    %v860 = vpop.permute.xlu0 %859
    %v862 = vmul.f32 %v856, %v860
    %864 = vrot.lane.b32.xlu0 %v862, 32
    %v865 = vpop.permute.xlu0 %864
    %v867 = vadd.f32 %v857, %v865
    %v868 = vtanh.pop %v867
    %870 = vrot.lane.b32.xlu0 %v868, 64
    %v871 = vpop.permute.xlu0 %870
    %v873 = vmul.f32 %v856, %v871
    %875 = vrot.lane.b32.xlu0 %v873, 32
    %v876 = vpop.permute.xlu0 %875
    %s878 = scalar_lea.vmem [#allocation2], 40
    %879 = vst.msk [vmem:[%s878] sm:$0xff] %vm107, %v876
    %s880 = scalar_lea.vmem [#allocation3], 48
    %v881 = vld [vmem:[%s880] sm:$0xff]
    %v882 = vsel %vm107, %v876, 0
    %884 = vmatprep.subr.mxu0 0.0
    %885 = vmatpush1.msra.mxu0 0.0
    %886 = vmatprep.subr.mxu0 0.0
    %887 = vmatpush1.msra.mxu0 0.0
    %888 = vmatprep.subr.mxu0 0.0
    %889 = vmatpush1.msra.mxu0 0.0
    %890 = vmatprep.subr.mxu0 0.0
    %891 = vmatpush1.msra.mxu0 0.0
    %892 = vmatprep.subr.mxu0 0.0
    %893 = vmatpush1.msra.mxu0 0.0
    %894 = vmatprep.subr.mxu0 0.0
    %895 = vmatpush1.msra.mxu0 0.0
    %896 = vmatprep.subr.mxu0 0.0
    %897 = vmatpush1.msra.mxu0 0.0
    %898 = vmatprep.subr.mxu0 0.0
    %899 = vmatpush1.msra.mxu0 0.0
    %900 = vmatprep.subr.mxu0 0.0
    %901 = vmatpush1.msra.mxu0 0.0
    %902 = vmatprep.subr.mxu0 0.0
    %903 = vmatpush1.msra.mxu0 0.0
    %904 = vmatprep.subr.mxu0 0.0
    %905 = vmatpush1.msra.mxu0 0.0
    %906 = vmatprep.subr.mxu0 0.0
    %907 = vmatpush1.msra.mxu0 0.0
    %908 = vmatprep.subr.mxu0 0.0
    %909 = vmatpush1.msra.mxu0 %v91
    %910 = vmatprep.subr.mxu0 0.0
    %911 = vmatpush1.msra.mxu0 %v90
    %912 = vmatprep.subr.mxu0 0.0
    %913 = vmatpush1.msra.mxu0 %v89
    %914 = vmatprep.subr.mxu0 0.0
    %915 = vmatpush1.msra.mxu0 %v88
    %916 = vmatprep.subr.mxu0 0.0
    %917 = vmatpush2.msra.mxu0 0.0
    %918 = vmatprep.subr.mxu0 0.0
    %919 = vmatpush2.msra.mxu0 0.0
    %920 = vmatprep.subr.mxu0 0.0
    %921 = vmatpush2.msra.mxu0 0.0
    %922 = vmatprep.subr.mxu0 0.0
    %923 = vmatpush2.msra.mxu0 0.0
    %924 = vmatprep.subr.mxu0 0.0
    %925 = vmatpush2.msra.mxu0 0.0
    %926 = vmatprep.subr.mxu0 0.0
    %927 = vmatpush2.msra.mxu0 0.0
    %928 = vmatprep.subr.mxu0 0.0
    %929 = vmatpush2.msra.mxu0 0.0
    %930 = vmatprep.subr.mxu0 0.0
    %931 = vmatpush2.msra.mxu0 0.0
    %932 = vmatprep.subr.mxu0 0.0
    %933 = vmatpush2.msra.mxu0 0.0
    %934 = vmatprep.subr.mxu0 0.0
    %935 = vmatpush2.msra.mxu0 0.0
    %936 = vmatprep.subr.mxu0 0.0
    %937 = vmatpush2.msra.mxu0 0.0
    %938 = vmatprep.subr.mxu0 0.0
    %939 = vmatpush2.msra.mxu0 0.0
    %940 = vmatprep.subr.mxu0 0.0
    %941 = vmatpush2.msra.mxu0 0.0
    %942 = vmatprep.subr.mxu0 0.0
    %943 = vmatpush2.msra.mxu0 0.0
    %944 = vmatprep.subr.mxu0 0.0
    %945 = vmatpush2.msra.mxu0 0.0
    %946 = vmatprep.subr.mxu0 0.0
    %947 = vmatpush2.msra.mxu0 0.0
    %948 = vmatprep.mubr.f32.mxu0 0.0
    %949 = vmatmul.mubr.f32.gmra.mxu0 %v882
    %v950 = vpop.f32.mrf.mxu0
    %v951 = vadd.f32 0.0, %v950
    %v952 = vpop.f32.mrf.mxu0
    %953 = vdwg.mxu0
    %v954 = vadd.f32 %v881, %v951
    %v955 = vtanh.pop %v954
    %v956 = vxor.u32 %v954, 2147483648
    %v957 = vmul.f32 %v956, 1.442695
    %v958 = vpow.pop %v957
    %v959 = vadd.f32 %v958, 1.0
    %v960 = vrcp.pop %v959
    %v961 = vmul.f32 1.0, %v960
    %v962 = vsel %vm83, %v955, %v961
    %v963 = vmul.f32 %v962, %v867
    %965 = vrot.lane.b32.xlu0 %v962, 64
    %v966 = vpop.permute.xlu0 %965
    %v968 = vmul.f32 %v962, %v966
    %970 = vrot.lane.b32.xlu0 %v968, 32
    %v971 = vpop.permute.xlu0 %970
    %v973 = vadd.f32 %v963, %v971
    %v974 = vtanh.pop %v973
    %976 = vrot.lane.b32.xlu0 %v974, 64
    %v977 = vpop.permute.xlu0 %976
    %v979 = vmul.f32 %v962, %v977
    %981 = vrot.lane.b32.xlu0 %v979, 32
    %v982 = vpop.permute.xlu0 %981
    %s984 = scalar_lea.vmem [#allocation2], 48
    %985 = vst.msk [vmem:[%s984] sm:$0xff] %vm107, %v982
    %s986 = scalar_lea.vmem [#allocation3], 56
    %v987 = vld [vmem:[%s986] sm:$0xff]
    %v988 = vsel %vm107, %v982, 0
    %990 = vmatprep.subr.mxu0 0.0
    %991 = vmatpush1.msra.mxu0 0.0
    %992 = vmatprep.subr.mxu0 0.0
    %993 = vmatpush1.msra.mxu0 0.0
    %994 = vmatprep.subr.mxu0 0.0
    %995 = vmatpush1.msra.mxu0 0.0
    %996 = vmatprep.subr.mxu0 0.0
    %997 = vmatpush1.msra.mxu0 0.0
    %998 = vmatprep.subr.mxu0 0.0
    %999 = vmatpush1.msra.mxu0 0.0
    %1000 = vmatprep.subr.mxu0 0.0
    %1001 = vmatpush1.msra.mxu0 0.0
    %1002 = vmatprep.subr.mxu0 0.0
    %1003 = vmatpush1.msra.mxu0 0.0
    %1004 = vmatprep.subr.mxu0 0.0
    %1005 = vmatpush1.msra.mxu0 0.0
    %1006 = vmatprep.subr.mxu0 0.0
    %1007 = vmatpush1.msra.mxu0 0.0
    %1008 = vmatprep.subr.mxu0 0.0
    %1009 = vmatpush1.msra.mxu0 0.0
    %1010 = vmatprep.subr.mxu0 0.0
    %1011 = vmatpush1.msra.mxu0 0.0
    %1012 = vmatprep.subr.mxu0 0.0
    %1013 = vmatpush1.msra.mxu0 0.0
    %1014 = vmatprep.subr.mxu0 0.0
    %1015 = vmatpush1.msra.mxu0 %v91
    %1016 = vmatprep.subr.mxu0 0.0
    %1017 = vmatpush1.msra.mxu0 %v90
    %1018 = vmatprep.subr.mxu0 0.0
    %1019 = vmatpush1.msra.mxu0 %v89
    %1020 = vmatprep.subr.mxu0 0.0
    %1021 = vmatpush1.msra.mxu0 %v88
    %1022 = vmatprep.subr.mxu0 0.0
    %1023 = vmatpush2.msra.mxu0 0.0
    %1024 = vmatprep.subr.mxu0 0.0
    %1025 = vmatpush2.msra.mxu0 0.0
    %1026 = vmatprep.subr.mxu0 0.0
    %1027 = vmatpush2.msra.mxu0 0.0
    %1028 = vmatprep.subr.mxu0 0.0
    %1029 = vmatpush2.msra.mxu0 0.0
    %1030 = vmatprep.subr.mxu0 0.0
    %1031 = vmatpush2.msra.mxu0 0.0
    %1032 = vmatprep.subr.mxu0 0.0
    %1033 = vmatpush2.msra.mxu0 0.0
    %1034 = vmatprep.subr.mxu0 0.0
    %1035 = vmatpush2.msra.mxu0 0.0
    %1036 = vmatprep.subr.mxu0 0.0
    %1037 = vmatpush2.msra.mxu0 0.0
    %1038 = vmatprep.subr.mxu0 0.0
    %1039 = vmatpush2.msra.mxu0 0.0
    %1040 = vmatprep.subr.mxu0 0.0
    %1041 = vmatpush2.msra.mxu0 0.0
    %1042 = vmatprep.subr.mxu0 0.0
    %1043 = vmatpush2.msra.mxu0 0.0
    %1044 = vmatprep.subr.mxu0 0.0
    %1045 = vmatpush2.msra.mxu0 0.0
    %1046 = vmatprep.subr.mxu0 0.0
    %1047 = vmatpush2.msra.mxu0 0.0
    %1048 = vmatprep.subr.mxu0 0.0
    %1049 = vmatpush2.msra.mxu0 0.0
    %1050 = vmatprep.subr.mxu0 0.0
    %1051 = vmatpush2.msra.mxu0 0.0
    %1052 = vmatprep.subr.mxu0 0.0
    %1053 = vmatpush2.msra.mxu0 0.0
    %1054 = vmatprep.mubr.f32.mxu0 0.0
    %1055 = vmatmul.mubr.f32.gmra.mxu0 %v988
    %v1056 = vpop.f32.mrf.mxu0
    %v1057 = vadd.f32 0.0, %v1056
    %v1058 = vpop.f32.mrf.mxu0
    %1059 = vdwg.mxu0
    %v1060 = vadd.f32 %v987, %v1057
    %v1061 = vtanh.pop %v1060
    %v1062 = vxor.u32 %v1060, 2147483648
    %v1063 = vmul.f32 %v1062, 1.442695
    %v1064 = vpow.pop %v1063
    %v1065 = vadd.f32 %v1064, 1.0
    %v1066 = vrcp.pop %v1065
    %v1067 = vmul.f32 1.0, %v1066
    %v1068 = vsel %vm83, %v1061, %v1067
    %v1069 = vmul.f32 %v1068, %v973
    %1071 = vrot.lane.b32.xlu0 %v1068, 64
    %v1072 = vpop.permute.xlu0 %1071
    %v1074 = vmul.f32 %v1068, %v1072
    %1076 = vrot.lane.b32.xlu0 %v1074, 32
    %v1077 = vpop.permute.xlu0 %1076
    %v1079 = vadd.f32 %v1069, %v1077
    %v1080 = vtanh.pop %v1079
    %1082 = vrot.lane.b32.xlu0 %v1080, 64
    %v1083 = vpop.permute.xlu0 %1082
    %v1085 = vmul.f32 %v1068, %v1083
    %1087 = vrot.lane.b32.xlu0 %v1085, 32
    %v1088 = vpop.permute.xlu0 %1087
    %s1090 = scalar_lea.vmem [#allocation2], 56
    %1091 = vst.msk [vmem:[%s1090] sm:$0xff] %vm107, %v1088
    %s1092 = scalar_lea.vmem [#allocation7], 32
    %v1093 = vld [vmem:[%s1092] sm:$0xff]
    %v1094 = vld [vmem:[%s1092 + $0x8] sm:$0xff]
    %v1095 = vld [vmem:[%s1092 + $0x10] sm:$0xff]
    %v1096 = vld [vmem:[%s1092 + $0x18] sm:$0xff]
    %s1097 = scalar_lea.vmem [#allocation9], 32
    %v1098 = vld [vmem:[%s1097] sm:$0xff]
    %v1099 = vld [vmem:[%s1097 + $0x8] sm:$0xff]
    %v1100 = vld [vmem:[%s1097 + $0x10] sm:$0xff]
    %v1101 = vld [vmem:[%s1097 + $0x18] sm:$0xff]
    %s1102 = scalar_lea.vmem %s3, 1
    %v1103 = vld [vmem:[%s1102] sm:$0x1]
    %v1104 = vld [vmem:[#allocation2] sm:$0xff]
    %v1105 = vld [vmem:[#allocation2 + $0x8] sm:$0xff]
    %v1106 = vld [vmem:[#allocation2 + $0x10] sm:$0xff]
    %v1107 = vld [vmem:[#allocation2 + $0x18] sm:$0xff]
    %v1108 = vld [vmem:[#allocation2 + $0x20] sm:$0xff]
    %v1109 = vld [vmem:[#allocation2 + $0x28] sm:$0xff]
    %v1110 = vld [vmem:[#allocation2 + $0x30] sm:$0xff]
    %v1111 = vld [vmem:[#allocation2 + $0x38] sm:$0xff]
    %v1113 = vlaneseq
    %v1114 = vshrl.u32 %v1113, 7
    %v1115 = vsub.s32 0, %v1114
    %v1116 = vrot.slane %v1103, %v1115
    %v1119 = vsel %vm107, %v1104, 0
    %v1122 = vsel %vm107, %v1105, 0
    %v1125 = vsel %vm107, %v1106, 0
    %v1128 = vsel %vm107, %v1107, 0
    %v1131 = vsel %vm107, %v1108, 0
    %v1134 = vsel %vm107, %v1109, 0
    %v1137 = vsel %vm107, %v1110, 0
    %v1140 = vsel %vm107, %v1111, 0
    %1142 = vmatprep.subr.mxu0 0.0
    %1143 = vmatpush1.msra.mxu0 0.0
    %1144 = vmatprep.subr.mxu0 0.0
    %1145 = vmatpush1.msra.mxu0 0.0
    %1146 = vmatprep.subr.mxu0 0.0
    %1147 = vmatpush1.msra.mxu0 0.0
    %1148 = vmatprep.subr.mxu0 0.0
    %1149 = vmatpush1.msra.mxu0 0.0
    %1150 = vmatprep.subr.mxu0 0.0
    %1151 = vmatpush1.msra.mxu0 0.0
    %1152 = vmatprep.subr.mxu0 0.0
    %1153 = vmatpush1.msra.mxu0 0.0
    %1154 = vmatprep.subr.mxu0 0.0
    %1155 = vmatpush1.msra.mxu0 0.0
    %1156 = vmatprep.subr.mxu0 0.0
    %1157 = vmatpush1.msra.mxu0 0.0
    %1158 = vmatprep.subr.mxu0 0.0
    %1159 = vmatpush1.msra.mxu0 0.0
    %1160 = vmatprep.subr.mxu0 0.0
    %1161 = vmatpush1.msra.mxu0 0.0
    %1162 = vmatprep.subr.mxu0 0.0
    %1163 = vmatpush1.msra.mxu0 0.0
    %1164 = vmatprep.subr.mxu0 0.0
    %1165 = vmatpush1.msra.mxu0 0.0
    %1166 = vmatprep.subr.mxu0 0.0
    %1167 = vmatpush1.msra.mxu0 %v1096
    %1168 = vmatprep.subr.mxu0 0.0
    %1169 = vmatpush1.msra.mxu0 %v1095
    %1170 = vmatprep.subr.mxu0 0.0
    %1171 = vmatpush1.msra.mxu0 %v1094
    %1172 = vmatprep.subr.mxu0 0.0
    %1173 = vmatpush1.msra.mxu0 %v1093
    %1174 = vmatprep.subr.mxu0 0.0
    %1175 = vmatpush2.msra.mxu0 0.0
    %1176 = vmatprep.subr.mxu0 0.0
    %1177 = vmatpush2.msra.mxu0 0.0
    %1178 = vmatprep.subr.mxu0 0.0
    %1179 = vmatpush2.msra.mxu0 0.0
    %1180 = vmatprep.subr.mxu0 0.0
    %1181 = vmatpush2.msra.mxu0 0.0
    %1182 = vmatprep.subr.mxu0 0.0
    %1183 = vmatpush2.msra.mxu0 0.0
    %1184 = vmatprep.subr.mxu0 0.0
    %1185 = vmatpush2.msra.mxu0 0.0
    %1186 = vmatprep.subr.mxu0 0.0
    %1187 = vmatpush2.msra.mxu0 0.0
    %1188 = vmatprep.subr.mxu0 0.0
    %1189 = vmatpush2.msra.mxu0 0.0
    %1190 = vmatprep.subr.mxu0 0.0
    %1191 = vmatpush2.msra.mxu0 0.0
    %1192 = vmatprep.subr.mxu0 0.0
    %1193 = vmatpush2.msra.mxu0 0.0
    %1194 = vmatprep.subr.mxu0 0.0
    %1195 = vmatpush2.msra.mxu0 0.0
    %1196 = vmatprep.subr.mxu0 0.0
    %1197 = vmatpush2.msra.mxu0 0.0
    %1198 = vmatprep.subr.mxu0 0.0
    %1199 = vmatpush2.msra.mxu0 0.0
    %1200 = vmatprep.subr.mxu0 0.0
    %1201 = vmatpush2.msra.mxu0 0.0
    %1202 = vmatprep.subr.mxu0 0.0
    %1203 = vmatpush2.msra.mxu0 0.0
    %1204 = vmatprep.subr.mxu0 0.0
    %1205 = vmatpush2.msra.mxu0 0.0
    %1206 = vmatprep.mubr.f32.mxu0 0.0
    %1207 = vmatmul.mubr.f32.gmra.mxu0 %v1119
    %v1208 = vpop.f32.mrf.mxu0
    %v1209 = vadd.f32 %v1116, %v1208
    %v1210 = vpop.f32.mrf.mxu0
    %1211 = vmatprep.mubr.f32.mxu0 0.0
    %1212 = vmatmul.mubr.f32.gmra.mxu0 %v1122
    %v1213 = vpop.f32.mrf.mxu0
    %v1214 = vadd.f32 %v1116, %v1213
    %v1215 = vpop.f32.mrf.mxu0
    %1216 = vmatprep.mubr.f32.mxu0 0.0
    %1217 = vmatmul.mubr.f32.gmra.mxu0 %v1125
    %v1218 = vpop.f32.mrf.mxu0
    %v1219 = vadd.f32 %v1116, %v1218
    %v1220 = vpop.f32.mrf.mxu0
    %1221 = vmatprep.mubr.f32.mxu0 0.0
    %1222 = vmatmul.mubr.f32.gmra.mxu0 %v1128
    %v1223 = vpop.f32.mrf.mxu0
    %v1224 = vadd.f32 %v1116, %v1223
    %v1225 = vpop.f32.mrf.mxu0
    %1226 = vmatprep.mubr.f32.mxu0 0.0
    %1227 = vmatmul.mubr.f32.gmra.mxu0 %v1131
    %v1228 = vpop.f32.mrf.mxu0
    %v1229 = vadd.f32 %v1116, %v1228
    %v1230 = vpop.f32.mrf.mxu0
    %1231 = vmatprep.mubr.f32.mxu0 0.0
    %1232 = vmatmul.mubr.f32.gmra.mxu0 %v1134
    %v1233 = vpop.f32.mrf.mxu0
    %v1234 = vadd.f32 %v1116, %v1233
    %v1235 = vpop.f32.mrf.mxu0
    %1236 = vmatprep.mubr.f32.mxu0 0.0
    %1237 = vmatmul.mubr.f32.gmra.mxu0 %v1137
    %v1238 = vpop.f32.mrf.mxu0
    %v1239 = vadd.f32 %v1116, %v1238
    %v1240 = vpop.f32.mrf.mxu0
    %1241 = vmatprep.mubr.f32.mxu0 0.0
    %1242 = vmatmul.mubr.f32.gmra.mxu0 %v1140
    %v1243 = vpop.f32.mrf.mxu0
    %v1244 = vadd.f32 %v1116, %v1243
    %v1245 = vpop.f32.mrf.mxu0
    %1246 = vdwg.mxu0
    %1247 = vst [vmem:[#allocation3] sm:$0xff] %v1209
    %1248 = vst [vmem:[#allocation3 + $0x8] sm:$0xff] %v1214
    %1249 = vst [vmem:[#allocation3 + $0x10] sm:$0xff] %v1219
    %1250 = vst [vmem:[#allocation3 + $0x18] sm:$0xff] %v1224
    %1251 = vst [vmem:[#allocation3 + $0x20] sm:$0xff] %v1229
    %1252 = vst [vmem:[#allocation3 + $0x28] sm:$0xff] %v1234
    %1253 = vst [vmem:[#allocation3 + $0x30] sm:$0xff] %v1239
    %1254 = vst [vmem:[#allocation3 + $0x38] sm:$0xff] %v1244
    %v1255 = vld [vmem:[#allocation3] sm:$0xff]
    %1256 = vmatprep.subr.mxu0 0.0
    %1257 = vmatpush1.msra.mxu0 0.0
    %1258 = vmatprep.subr.mxu0 0.0
    %1259 = vmatpush1.msra.mxu0 0.0
    %1260 = vmatprep.subr.mxu0 0.0
    %1261 = vmatpush1.msra.mxu0 0.0
    %1262 = vmatprep.subr.mxu0 0.0
    %1263 = vmatpush1.msra.mxu0 0.0
    %1264 = vmatprep.subr.mxu0 0.0
    %1265 = vmatpush1.msra.mxu0 0.0
    %1266 = vmatprep.subr.mxu0 0.0
    %1267 = vmatpush1.msra.mxu0 0.0
    %1268 = vmatprep.subr.mxu0 0.0
    %1269 = vmatpush1.msra.mxu0 0.0
    %1270 = vmatprep.subr.mxu0 0.0
    %1271 = vmatpush1.msra.mxu0 0.0
    %1272 = vmatprep.subr.mxu0 0.0
    %1273 = vmatpush1.msra.mxu0 0.0
    %1274 = vmatprep.subr.mxu0 0.0
    %1275 = vmatpush1.msra.mxu0 0.0
    %1276 = vmatprep.subr.mxu0 0.0
    %1277 = vmatpush1.msra.mxu0 0.0
    %1278 = vmatprep.subr.mxu0 0.0
    %1279 = vmatpush1.msra.mxu0 0.0
    %1280 = vmatprep.subr.mxu0 0.0
    %1281 = vmatpush1.msra.mxu0 %v1101
    %1282 = vmatprep.subr.mxu0 0.0
    %1283 = vmatpush1.msra.mxu0 %v1100
    %1284 = vmatprep.subr.mxu0 0.0
    %1285 = vmatpush1.msra.mxu0 %v1099
    %1286 = vmatprep.subr.mxu0 0.0
    %1287 = vmatpush1.msra.mxu0 %v1098
    %1288 = vmatprep.subr.mxu0 0.0
    %1289 = vmatpush2.msra.mxu0 0.0
    %1290 = vmatprep.subr.mxu0 0.0
    %1291 = vmatpush2.msra.mxu0 0.0
    %1292 = vmatprep.subr.mxu0 0.0
    %1293 = vmatpush2.msra.mxu0 0.0
    %1294 = vmatprep.subr.mxu0 0.0
    %1295 = vmatpush2.msra.mxu0 0.0
    %1296 = vmatprep.subr.mxu0 0.0
    %1297 = vmatpush2.msra.mxu0 0.0
    %1298 = vmatprep.subr.mxu0 0.0
    %1299 = vmatpush2.msra.mxu0 0.0
    %1300 = vmatprep.subr.mxu0 0.0
    %1301 = vmatpush2.msra.mxu0 0.0
    %1302 = vmatprep.subr.mxu0 0.0
    %1303 = vmatpush2.msra.mxu0 0.0
    %1304 = vmatprep.subr.mxu0 0.0
    %1305 = vmatpush2.msra.mxu0 0.0
    %1306 = vmatprep.subr.mxu0 0.0
    %1307 = vmatpush2.msra.mxu0 0.0
    %1308 = vmatprep.subr.mxu0 0.0
    %1309 = vmatpush2.msra.mxu0 0.0
    %1310 = vmatprep.subr.mxu0 0.0
    %1311 = vmatpush2.msra.mxu0 0.0
    %1312 = vmatprep.subr.mxu0 0.0
    %1313 = vmatpush2.msra.mxu0 0.0
    %1314 = vmatprep.subr.mxu0 0.0
    %1315 = vmatpush2.msra.mxu0 0.0
    %1316 = vmatprep.subr.mxu0 0.0
    %1317 = vmatpush2.msra.mxu0 0.0
    %1318 = vmatprep.subr.mxu0 0.0
    %1319 = vmatpush2.msra.mxu0 0.0
    %1320 = vmatprep.mubr.f32.mxu0 0.0
    %1321 = vmatmul.mubr.f32.gmra.mxu0 %v247
    %v1322 = vpop.f32.mrf.mxu0
    %v1323 = vadd.f32 0.0, %v1322
    %v1324 = vpop.f32.mrf.mxu0
    %1325 = vdwg.mxu0
    %v1326 = vadd.f32 %v1255, %v1323
    %v1327 = vtanh.pop %v1326
    %v1328 = vxor.u32 %v1326, 2147483648
    %v1329 = vmul.f32 %v1328, 1.442695
    %v1330 = vpow.pop %v1329
    %v1331 = vadd.f32 %v1330, 1.0
    %v1332 = vrcp.pop %v1331
    %v1333 = vmul.f32 1.0, %v1332
    %v1334 = vsel %vm83, %v1327, %v1333
    %v1335 = vmul.f32 %v1334, 0.0
    %1337 = vrot.lane.b32.xlu0 %v1334, 64
    %v1338 = vpop.permute.xlu0 %1337
    %v1340 = vmul.f32 %v1334, %v1338
    %1342 = vrot.lane.b32.xlu0 %v1340, 32
    %v1343 = vpop.permute.xlu0 %1342
    %v1345 = vadd.f32 %v1335, %v1343
    %v1346 = vtanh.pop %v1345
    %1348 = vrot.lane.b32.xlu0 %v1346, 64
    %v1349 = vpop.permute.xlu0 %1348
    %v1351 = vmul.f32 %v1334, %v1349
    %v1352 = vld [vmem:[%s350] sm:$0xff]
    %1354 = vrot.lane.b32.xlu0 %v1351, 32
    %v1355 = vpop.permute.xlu0 %1354
    %v1356 = vsel %vm107, %v1355, 0
    %1358 = vmatprep.subr.mxu0 0.0
    %1359 = vmatpush1.msra.mxu0 0.0
    %1360 = vmatprep.subr.mxu0 0.0
    %1361 = vmatpush1.msra.mxu0 0.0
    %1362 = vmatprep.subr.mxu0 0.0
    %1363 = vmatpush1.msra.mxu0 0.0
    %1364 = vmatprep.subr.mxu0 0.0
    %1365 = vmatpush1.msra.mxu0 0.0
    %1366 = vmatprep.subr.mxu0 0.0
    %1367 = vmatpush1.msra.mxu0 0.0
    %1368 = vmatprep.subr.mxu0 0.0
    %1369 = vmatpush1.msra.mxu0 0.0
    %1370 = vmatprep.subr.mxu0 0.0
    %1371 = vmatpush1.msra.mxu0 0.0
    %1372 = vmatprep.subr.mxu0 0.0
    %1373 = vmatpush1.msra.mxu0 0.0
    %1374 = vmatprep.subr.mxu0 0.0
    %1375 = vmatpush1.msra.mxu0 0.0
    %1376 = vmatprep.subr.mxu0 0.0
    %1377 = vmatpush1.msra.mxu0 0.0
    %1378 = vmatprep.subr.mxu0 0.0
    %1379 = vmatpush1.msra.mxu0 0.0
    %1380 = vmatprep.subr.mxu0 0.0
    %1381 = vmatpush1.msra.mxu0 0.0
    %1382 = vmatprep.subr.mxu0 0.0
    %1383 = vmatpush1.msra.mxu0 %v1101
    %1384 = vmatprep.subr.mxu0 0.0
    %1385 = vmatpush1.msra.mxu0 %v1100
    %1386 = vmatprep.subr.mxu0 0.0
    %1387 = vmatpush1.msra.mxu0 %v1099
    %1388 = vmatprep.subr.mxu0 0.0
    %1389 = vmatpush1.msra.mxu0 %v1098
    %1390 = vmatprep.subr.mxu0 0.0
    %1391 = vmatpush2.msra.mxu0 0.0
    %1392 = vmatprep.subr.mxu0 0.0
    %1393 = vmatpush2.msra.mxu0 0.0
    %1394 = vmatprep.subr.mxu0 0.0
    %1395 = vmatpush2.msra.mxu0 0.0
    %1396 = vmatprep.subr.mxu0 0.0
    %1397 = vmatpush2.msra.mxu0 0.0
    %1398 = vmatprep.subr.mxu0 0.0
    %1399 = vmatpush2.msra.mxu0 0.0
    %1400 = vmatprep.subr.mxu0 0.0
    %1401 = vmatpush2.msra.mxu0 0.0
    %1402 = vmatprep.subr.mxu0 0.0
    %1403 = vmatpush2.msra.mxu0 0.0
    %1404 = vmatprep.subr.mxu0 0.0
    %1405 = vmatpush2.msra.mxu0 0.0
    %1406 = vmatprep.subr.mxu0 0.0
    %1407 = vmatpush2.msra.mxu0 0.0
    %1408 = vmatprep.subr.mxu0 0.0
    %1409 = vmatpush2.msra.mxu0 0.0
    %1410 = vmatprep.subr.mxu0 0.0
    %1411 = vmatpush2.msra.mxu0 0.0
    %1412 = vmatprep.subr.mxu0 0.0
    %1413 = vmatpush2.msra.mxu0 0.0
    %1414 = vmatprep.subr.mxu0 0.0
    %1415 = vmatpush2.msra.mxu0 0.0
    %1416 = vmatprep.subr.mxu0 0.0
    %1417 = vmatpush2.msra.mxu0 0.0
    %1418 = vmatprep.subr.mxu0 0.0
    %1419 = vmatpush2.msra.mxu0 0.0
    %1420 = vmatprep.subr.mxu0 0.0
    %1421 = vmatpush2.msra.mxu0 0.0
    %1422 = vmatprep.mubr.f32.mxu0 0.0
    %1423 = vmatmul.mubr.f32.gmra.mxu0 %v1356
    %v1424 = vpop.f32.mrf.mxu0
    %v1425 = vadd.f32 0.0, %v1424
    %v1426 = vpop.f32.mrf.mxu0
    %1427 = vdwg.mxu0
    %v1428 = vadd.f32 %v1352, %v1425
    %v1429 = vtanh.pop %v1428
    %v1430 = vxor.u32 %v1428, 2147483648
    %v1431 = vmul.f32 %v1430, 1.442695
    %v1432 = vpow.pop %v1431
    %v1433 = vadd.f32 %v1432, 1.0
    %v1434 = vrcp.pop %v1433
    %v1435 = vmul.f32 1.0, %v1434
    %v1436 = vsel %vm83, %v1429, %v1435
    %v1437 = vmul.f32 %v1436, %v1345
    %1439 = vrot.lane.b32.xlu0 %v1436, 64
    %v1440 = vpop.permute.xlu0 %1439
    %v1442 = vmul.f32 %v1436, %v1440
    %1444 = vrot.lane.b32.xlu0 %v1442, 32
    %v1445 = vpop.permute.xlu0 %1444
    %v1447 = vadd.f32 %v1437, %v1445
    %v1448 = vtanh.pop %v1447
    %1450 = vrot.lane.b32.xlu0 %v1448, 64
    %v1451 = vpop.permute.xlu0 %1450
    %v1453 = vmul.f32 %v1436, %v1451
    %v1454 = vld [vmem:[%s456] sm:$0xff]
    %1456 = vrot.lane.b32.xlu0 %v1453, 32
    %v1457 = vpop.permute.xlu0 %1456
    %v1458 = vsel %vm107, %v1457, 0
    %1460 = vmatprep.subr.mxu0 0.0
    %1461 = vmatpush1.msra.mxu0 0.0
    %1462 = vmatprep.subr.mxu0 0.0
    %1463 = vmatpush1.msra.mxu0 0.0
    %1464 = vmatprep.subr.mxu0 0.0
    %1465 = vmatpush1.msra.mxu0 0.0
    %1466 = vmatprep.subr.mxu0 0.0
    %1467 = vmatpush1.msra.mxu0 0.0
    %1468 = vmatprep.subr.mxu0 0.0
    %1469 = vmatpush1.msra.mxu0 0.0
    %1470 = vmatprep.subr.mxu0 0.0
    %1471 = vmatpush1.msra.mxu0 0.0
    %1472 = vmatprep.subr.mxu0 0.0
    %1473 = vmatpush1.msra.mxu0 0.0
    %1474 = vmatprep.subr.mxu0 0.0
    %1475 = vmatpush1.msra.mxu0 0.0
    %1476 = vmatprep.subr.mxu0 0.0
    %1477 = vmatpush1.msra.mxu0 0.0
    %1478 = vmatprep.subr.mxu0 0.0
    %1479 = vmatpush1.msra.mxu0 0.0
    %1480 = vmatprep.subr.mxu0 0.0
    %1481 = vmatpush1.msra.mxu0 0.0
    %1482 = vmatprep.subr.mxu0 0.0
    %1483 = vmatpush1.msra.mxu0 0.0
    %1484 = vmatprep.subr.mxu0 0.0
    %1485 = vmatpush1.msra.mxu0 %v1101
    %1486 = vmatprep.subr.mxu0 0.0
    %1487 = vmatpush1.msra.mxu0 %v1100
    %1488 = vmatprep.subr.mxu0 0.0
    %1489 = vmatpush1.msra.mxu0 %v1099
    %1490 = vmatprep.subr.mxu0 0.0
    %1491 = vmatpush1.msra.mxu0 %v1098
    %1492 = vmatprep.subr.mxu0 0.0
    %1493 = vmatpush2.msra.mxu0 0.0
    %1494 = vmatprep.subr.mxu0 0.0
    %1495 = vmatpush2.msra.mxu0 0.0
    %1496 = vmatprep.subr.mxu0 0.0
    %1497 = vmatpush2.msra.mxu0 0.0
    %1498 = vmatprep.subr.mxu0 0.0
    %1499 = vmatpush2.msra.mxu0 0.0
    %1500 = vmatprep.subr.mxu0 0.0
    %1501 = vmatpush2.msra.mxu0 0.0
    %1502 = vmatprep.subr.mxu0 0.0
    %1503 = vmatpush2.msra.mxu0 0.0
    %1504 = vmatprep.subr.mxu0 0.0
    %1505 = vmatpush2.msra.mxu0 0.0
    %1506 = vmatprep.subr.mxu0 0.0
    %1507 = vmatpush2.msra.mxu0 0.0
    %1508 = vmatprep.subr.mxu0 0.0
    %1509 = vmatpush2.msra.mxu0 0.0
    %1510 = vmatprep.subr.mxu0 0.0
    %1511 = vmatpush2.msra.mxu0 0.0
    %1512 = vmatprep.subr.mxu0 0.0
    %1513 = vmatpush2.msra.mxu0 0.0
    %1514 = vmatprep.subr.mxu0 0.0
    %1515 = vmatpush2.msra.mxu0 0.0
    %1516 = vmatprep.subr.mxu0 0.0
    %1517 = vmatpush2.msra.mxu0 0.0
    %1518 = vmatprep.subr.mxu0 0.0
    %1519 = vmatpush2.msra.mxu0 0.0
    %1520 = vmatprep.subr.mxu0 0.0
    %1521 = vmatpush2.msra.mxu0 0.0
    %1522 = vmatprep.subr.mxu0 0.0
    %1523 = vmatpush2.msra.mxu0 0.0
    %1524 = vmatprep.mubr.f32.mxu0 0.0
    %1525 = vmatmul.mubr.f32.gmra.mxu0 %v1458
    %v1526 = vpop.f32.mrf.mxu0
    %v1527 = vadd.f32 0.0, %v1526
    %v1528 = vpop.f32.mrf.mxu0
    %1529 = vdwg.mxu0
    %v1530 = vadd.f32 %v1454, %v1527
    %v1531 = vtanh.pop %v1530
    %v1532 = vxor.u32 %v1530, 2147483648
    %v1533 = vmul.f32 %v1532, 1.442695
    %v1534 = vpow.pop %v1533
    %v1535 = vadd.f32 %v1534, 1.0
    %v1536 = vrcp.pop %v1535
    %v1537 = vmul.f32 1.0, %v1536
    %v1538 = vsel %vm83, %v1531, %v1537
    %v1539 = vmul.f32 %v1538, %v1447
    %1541 = vrot.lane.b32.xlu0 %v1538, 64
    %v1542 = vpop.permute.xlu0 %1541
    %v1544 = vmul.f32 %v1538, %v1542
    %1546 = vrot.lane.b32.xlu0 %v1544, 32
    %v1547 = vpop.permute.xlu0 %1546
    %v1549 = vadd.f32 %v1539, %v1547
    %v1550 = vtanh.pop %v1549
    %1552 = vrot.lane.b32.xlu0 %v1550, 64
    %v1553 = vpop.permute.xlu0 %1552
    %v1555 = vmul.f32 %v1538, %v1553
    %v1556 = vld [vmem:[%s562] sm:$0xff]
    %1558 = vrot.lane.b32.xlu0 %v1555, 32
    %v1559 = vpop.permute.xlu0 %1558
    %v1560 = vsel %vm107, %v1559, 0
    %1562 = vmatprep.subr.mxu0 0.0
    %1563 = vmatpush1.msra.mxu0 0.0
    %1564 = vmatprep.subr.mxu0 0.0
    %1565 = vmatpush1.msra.mxu0 0.0
    %1566 = vmatprep.subr.mxu0 0.0
    %1567 = vmatpush1.msra.mxu0 0.0
    %1568 = vmatprep.subr.mxu0 0.0
    %1569 = vmatpush1.msra.mxu0 0.0
    %1570 = vmatprep.subr.mxu0 0.0
    %1571 = vmatpush1.msra.mxu0 0.0
    %1572 = vmatprep.subr.mxu0 0.0
    %1573 = vmatpush1.msra.mxu0 0.0
    %1574 = vmatprep.subr.mxu0 0.0
    %1575 = vmatpush1.msra.mxu0 0.0
    %1576 = vmatprep.subr.mxu0 0.0
    %1577 = vmatpush1.msra.mxu0 0.0
    %1578 = vmatprep.subr.mxu0 0.0
    %1579 = vmatpush1.msra.mxu0 0.0
    %1580 = vmatprep.subr.mxu0 0.0
    %1581 = vmatpush1.msra.mxu0 0.0
    %1582 = vmatprep.subr.mxu0 0.0
    %1583 = vmatpush1.msra.mxu0 0.0
    %1584 = vmatprep.subr.mxu0 0.0
    %1585 = vmatpush1.msra.mxu0 0.0
    %1586 = vmatprep.subr.mxu0 0.0
    %1587 = vmatpush1.msra.mxu0 %v1101
    %1588 = vmatprep.subr.mxu0 0.0
    %1589 = vmatpush1.msra.mxu0 %v1100
    %1590 = vmatprep.subr.mxu0 0.0
    %1591 = vmatpush1.msra.mxu0 %v1099
    %1592 = vmatprep.subr.mxu0 0.0
    %1593 = vmatpush1.msra.mxu0 %v1098
    %1594 = vmatprep.subr.mxu0 0.0
    %1595 = vmatpush2.msra.mxu0 0.0
    %1596 = vmatprep.subr.mxu0 0.0
    %1597 = vmatpush2.msra.mxu0 0.0
    %1598 = vmatprep.subr.mxu0 0.0
    %1599 = vmatpush2.msra.mxu0 0.0
    %1600 = vmatprep.subr.mxu0 0.0
    %1601 = vmatpush2.msra.mxu0 0.0
    %1602 = vmatprep.subr.mxu0 0.0
    %1603 = vmatpush2.msra.mxu0 0.0
    %1604 = vmatprep.subr.mxu0 0.0
    %1605 = vmatpush2.msra.mxu0 0.0
    %1606 = vmatprep.subr.mxu0 0.0
    %1607 = vmatpush2.msra.mxu0 0.0
    %1608 = vmatprep.subr.mxu0 0.0
    %1609 = vmatpush2.msra.mxu0 0.0
    %1610 = vmatprep.subr.mxu0 0.0
    %1611 = vmatpush2.msra.mxu0 0.0
    %1612 = vmatprep.subr.mxu0 0.0
    %1613 = vmatpush2.msra.mxu0 0.0
    %1614 = vmatprep.subr.mxu0 0.0
    %1615 = vmatpush2.msra.mxu0 0.0
    %1616 = vmatprep.subr.mxu0 0.0
    %1617 = vmatpush2.msra.mxu0 0.0
    %1618 = vmatprep.subr.mxu0 0.0
    %1619 = vmatpush2.msra.mxu0 0.0
    %1620 = vmatprep.subr.mxu0 0.0
    %1621 = vmatpush2.msra.mxu0 0.0
    %1622 = vmatprep.subr.mxu0 0.0
    %1623 = vmatpush2.msra.mxu0 0.0
    %1624 = vmatprep.subr.mxu0 0.0
    %1625 = vmatpush2.msra.mxu0 0.0
    %1626 = vmatprep.mubr.f32.mxu0 0.0
    %1627 = vmatmul.mubr.f32.gmra.mxu0 %v1560
    %v1628 = vpop.f32.mrf.mxu0
    %v1629 = vadd.f32 0.0, %v1628
    %v1630 = vpop.f32.mrf.mxu0
    %1631 = vdwg.mxu0
    %v1632 = vadd.f32 %v1556, %v1629
    %v1633 = vtanh.pop %v1632
    %v1634 = vxor.u32 %v1632, 2147483648
    %v1635 = vmul.f32 %v1634, 1.442695
    %v1636 = vpow.pop %v1635
    %v1637 = vadd.f32 %v1636, 1.0
    %v1638 = vrcp.pop %v1637
    %v1639 = vmul.f32 1.0, %v1638
    %v1640 = vsel %vm83, %v1633, %v1639
    %v1641 = vmul.f32 %v1640, %v1549
    %1643 = vrot.lane.b32.xlu0 %v1640, 64
    %v1644 = vpop.permute.xlu0 %1643
    %v1646 = vmul.f32 %v1640, %v1644
    %1648 = vrot.lane.b32.xlu0 %v1646, 32
    %v1649 = vpop.permute.xlu0 %1648
    %v1651 = vadd.f32 %v1641, %v1649
    %v1652 = vtanh.pop %v1651
    %1654 = vrot.lane.b32.xlu0 %v1652, 64
    %v1655 = vpop.permute.xlu0 %1654
    %v1657 = vmul.f32 %v1640, %v1655
    %v1658 = vld [vmem:[%s668] sm:$0xff]
    %1660 = vrot.lane.b32.xlu0 %v1657, 32
    %v1661 = vpop.permute.xlu0 %1660
    %v1662 = vsel %vm107, %v1661, 0
    %1664 = vmatprep.subr.mxu0 0.0
    %1665 = vmatpush1.msra.mxu0 0.0
    %1666 = vmatprep.subr.mxu0 0.0
    %1667 = vmatpush1.msra.mxu0 0.0
    %1668 = vmatprep.subr.mxu0 0.0
    %1669 = vmatpush1.msra.mxu0 0.0
    %1670 = vmatprep.subr.mxu0 0.0
    %1671 = vmatpush1.msra.mxu0 0.0
    %1672 = vmatprep.subr.mxu0 0.0
    %1673 = vmatpush1.msra.mxu0 0.0
    %1674 = vmatprep.subr.mxu0 0.0
    %1675 = vmatpush1.msra.mxu0 0.0
    %1676 = vmatprep.subr.mxu0 0.0
    %1677 = vmatpush1.msra.mxu0 0.0
    %1678 = vmatprep.subr.mxu0 0.0
    %1679 = vmatpush1.msra.mxu0 0.0
    %1680 = vmatprep.subr.mxu0 0.0
    %1681 = vmatpush1.msra.mxu0 0.0
    %1682 = vmatprep.subr.mxu0 0.0
    %1683 = vmatpush1.msra.mxu0 0.0
    %1684 = vmatprep.subr.mxu0 0.0
    %1685 = vmatpush1.msra.mxu0 0.0
    %1686 = vmatprep.subr.mxu0 0.0
    %1687 = vmatpush1.msra.mxu0 0.0
    %1688 = vmatprep.subr.mxu0 0.0
    %1689 = vmatpush1.msra.mxu0 %v1101
    %1690 = vmatprep.subr.mxu0 0.0
    %1691 = vmatpush1.msra.mxu0 %v1100
    %1692 = vmatprep.subr.mxu0 0.0
    %1693 = vmatpush1.msra.mxu0 %v1099
    %1694 = vmatprep.subr.mxu0 0.0
    %1695 = vmatpush1.msra.mxu0 %v1098
    %1696 = vmatprep.subr.mxu0 0.0
    %1697 = vmatpush2.msra.mxu0 0.0
    %1698 = vmatprep.subr.mxu0 0.0
    %1699 = vmatpush2.msra.mxu0 0.0
    %1700 = vmatprep.subr.mxu0 0.0
    %1701 = vmatpush2.msra.mxu0 0.0
    %1702 = vmatprep.subr.mxu0 0.0
    %1703 = vmatpush2.msra.mxu0 0.0
    %1704 = vmatprep.subr.mxu0 0.0
    %1705 = vmatpush2.msra.mxu0 0.0
    %1706 = vmatprep.subr.mxu0 0.0
    %1707 = vmatpush2.msra.mxu0 0.0
    %1708 = vmatprep.subr.mxu0 0.0
    %1709 = vmatpush2.msra.mxu0 0.0
    %1710 = vmatprep.subr.mxu0 0.0
    %1711 = vmatpush2.msra.mxu0 0.0
    %1712 = vmatprep.subr.mxu0 0.0
    %1713 = vmatpush2.msra.mxu0 0.0
    %1714 = vmatprep.subr.mxu0 0.0
    %1715 = vmatpush2.msra.mxu0 0.0
    %1716 = vmatprep.subr.mxu0 0.0
    %1717 = vmatpush2.msra.mxu0 0.0
    %1718 = vmatprep.subr.mxu0 0.0
    %1719 = vmatpush2.msra.mxu0 0.0
    %1720 = vmatprep.subr.mxu0 0.0
    %1721 = vmatpush2.msra.mxu0 0.0
    %1722 = vmatprep.subr.mxu0 0.0
    %1723 = vmatpush2.msra.mxu0 0.0
    %1724 = vmatprep.subr.mxu0 0.0
    %1725 = vmatpush2.msra.mxu0 0.0
    %1726 = vmatprep.subr.mxu0 0.0
    %1727 = vmatpush2.msra.mxu0 0.0
    %1728 = vmatprep.mubr.f32.mxu0 0.0
    %1729 = vmatmul.mubr.f32.gmra.mxu0 %v1662
    %v1730 = vpop.f32.mrf.mxu0
    %v1731 = vadd.f32 0.0, %v1730
    %v1732 = vpop.f32.mrf.mxu0
    %1733 = vdwg.mxu0
    %v1734 = vadd.f32 %v1658, %v1731
    %v1735 = vtanh.pop %v1734
    %v1736 = vxor.u32 %v1734, 2147483648
    %v1737 = vmul.f32 %v1736, 1.442695
    %v1738 = vpow.pop %v1737
    %v1739 = vadd.f32 %v1738, 1.0
    %v1740 = vrcp.pop %v1739
    %v1741 = vmul.f32 1.0, %v1740
    %v1742 = vsel %vm83, %v1735, %v1741
    %v1743 = vmul.f32 %v1742, %v1651
    %1745 = vrot.lane.b32.xlu0 %v1742, 64
    %v1746 = vpop.permute.xlu0 %1745
    %v1748 = vmul.f32 %v1742, %v1746
    %1750 = vrot.lane.b32.xlu0 %v1748, 32
    %v1751 = vpop.permute.xlu0 %1750
    %v1753 = vadd.f32 %v1743, %v1751
    %v1754 = vtanh.pop %v1753
    %1756 = vrot.lane.b32.xlu0 %v1754, 64
    %v1757 = vpop.permute.xlu0 %1756
    %v1759 = vmul.f32 %v1742, %v1757
    %v1760 = vld [vmem:[%s774] sm:$0xff]
    %1762 = vrot.lane.b32.xlu0 %v1759, 32
    %v1763 = vpop.permute.xlu0 %1762
    %v1764 = vsel %vm107, %v1763, 0
    %1766 = vmatprep.subr.mxu0 0.0
    %1767 = vmatpush1.msra.mxu0 0.0
    %1768 = vmatprep.subr.mxu0 0.0
    %1769 = vmatpush1.msra.mxu0 0.0
    %1770 = vmatprep.subr.mxu0 0.0
    %1771 = vmatpush1.msra.mxu0 0.0
    %1772 = vmatprep.subr.mxu0 0.0
    %1773 = vmatpush1.msra.mxu0 0.0
    %1774 = vmatprep.subr.mxu0 0.0
    %1775 = vmatpush1.msra.mxu0 0.0
    %1776 = vmatprep.subr.mxu0 0.0
    %1777 = vmatpush1.msra.mxu0 0.0
    %1778 = vmatprep.subr.mxu0 0.0
    %1779 = vmatpush1.msra.mxu0 0.0
    %1780 = vmatprep.subr.mxu0 0.0
    %1781 = vmatpush1.msra.mxu0 0.0
    %1782 = vmatprep.subr.mxu0 0.0
    %1783 = vmatpush1.msra.mxu0 0.0
    %1784 = vmatprep.subr.mxu0 0.0
    %1785 = vmatpush1.msra.mxu0 0.0
    %1786 = vmatprep.subr.mxu0 0.0
    %1787 = vmatpush1.msra.mxu0 0.0
    %1788 = vmatprep.subr.mxu0 0.0
    %1789 = vmatpush1.msra.mxu0 0.0
    %1790 = vmatprep.subr.mxu0 0.0
    %1791 = vmatpush1.msra.mxu0 %v1101
    %1792 = vmatprep.subr.mxu0 0.0
    %1793 = vmatpush1.msra.mxu0 %v1100
    %1794 = vmatprep.subr.mxu0 0.0
    %1795 = vmatpush1.msra.mxu0 %v1099
    %1796 = vmatprep.subr.mxu0 0.0
    %1797 = vmatpush1.msra.mxu0 %v1098
    %1798 = vmatprep.subr.mxu0 0.0
    %1799 = vmatpush2.msra.mxu0 0.0
    %1800 = vmatprep.subr.mxu0 0.0
    %1801 = vmatpush2.msra.mxu0 0.0
    %1802 = vmatprep.subr.mxu0 0.0
    %1803 = vmatpush2.msra.mxu0 0.0
    %1804 = vmatprep.subr.mxu0 0.0
    %1805 = vmatpush2.msra.mxu0 0.0
    %1806 = vmatprep.subr.mxu0 0.0
    %1807 = vmatpush2.msra.mxu0 0.0
    %1808 = vmatprep.subr.mxu0 0.0
    %1809 = vmatpush2.msra.mxu0 0.0
    %1810 = vmatprep.subr.mxu0 0.0
    %1811 = vmatpush2.msra.mxu0 0.0
    %1812 = vmatprep.subr.mxu0 0.0
    %1813 = vmatpush2.msra.mxu0 0.0
    %1814 = vmatprep.subr.mxu0 0.0
    %1815 = vmatpush2.msra.mxu0 0.0
    %1816 = vmatprep.subr.mxu0 0.0
    %1817 = vmatpush2.msra.mxu0 0.0
    %1818 = vmatprep.subr.mxu0 0.0
    %1819 = vmatpush2.msra.mxu0 0.0
    %1820 = vmatprep.subr.mxu0 0.0
    %1821 = vmatpush2.msra.mxu0 0.0
    %1822 = vmatprep.subr.mxu0 0.0
    %1823 = vmatpush2.msra.mxu0 0.0
    %1824 = vmatprep.subr.mxu0 0.0
    %1825 = vmatpush2.msra.mxu0 0.0
    %1826 = vmatprep.subr.mxu0 0.0
    %1827 = vmatpush2.msra.mxu0 0.0
    %1828 = vmatprep.subr.mxu0 0.0
    %1829 = vmatpush2.msra.mxu0 0.0
    %1830 = vmatprep.mubr.f32.mxu0 0.0
    %1831 = vmatmul.mubr.f32.gmra.mxu0 %v1764
    %v1832 = vpop.f32.mrf.mxu0
    %v1833 = vadd.f32 0.0, %v1832
    %v1834 = vpop.f32.mrf.mxu0
    %1835 = vdwg.mxu0
    %v1836 = vadd.f32 %v1760, %v1833
    %v1837 = vtanh.pop %v1836
    %v1838 = vxor.u32 %v1836, 2147483648
    %v1839 = vmul.f32 %v1838, 1.442695
    %v1840 = vpow.pop %v1839
    %v1841 = vadd.f32 %v1840, 1.0
    %v1842 = vrcp.pop %v1841
    %v1843 = vmul.f32 1.0, %v1842
    %v1844 = vsel %vm83, %v1837, %v1843
    %v1845 = vmul.f32 %v1844, %v1753
    %1847 = vrot.lane.b32.xlu0 %v1844, 64
    %v1848 = vpop.permute.xlu0 %1847
    %v1850 = vmul.f32 %v1844, %v1848
    %1852 = vrot.lane.b32.xlu0 %v1850, 32
    %v1853 = vpop.permute.xlu0 %1852
    %v1855 = vadd.f32 %v1845, %v1853
    %v1856 = vtanh.pop %v1855
    %1858 = vrot.lane.b32.xlu0 %v1856, 64
    %v1859 = vpop.permute.xlu0 %1858
    %v1861 = vmul.f32 %v1844, %v1859
    %v1862 = vld [vmem:[%s880] sm:$0xff]
    %1864 = vrot.lane.b32.xlu0 %v1861, 32
    %v1865 = vpop.permute.xlu0 %1864
    %v1866 = vsel %vm107, %v1865, 0
    %1868 = vmatprep.subr.mxu0 0.0
    %1869 = vmatpush1.msra.mxu0 0.0
    %1870 = vmatprep.subr.mxu0 0.0
    %1871 = vmatpush1.msra.mxu0 0.0
    %1872 = vmatprep.subr.mxu0 0.0
    %1873 = vmatpush1.msra.mxu0 0.0
    %1874 = vmatprep.subr.mxu0 0.0
    %1875 = vmatpush1.msra.mxu0 0.0
    %1876 = vmatprep.subr.mxu0 0.0
    %1877 = vmatpush1.msra.mxu0 0.0
    %1878 = vmatprep.subr.mxu0 0.0
    %1879 = vmatpush1.msra.mxu0 0.0
    %1880 = vmatprep.subr.mxu0 0.0
    %1881 = vmatpush1.msra.mxu0 0.0
    %1882 = vmatprep.subr.mxu0 0.0
    %1883 = vmatpush1.msra.mxu0 0.0
    %1884 = vmatprep.subr.mxu0 0.0
    %1885 = vmatpush1.msra.mxu0 0.0
    %1886 = vmatprep.subr.mxu0 0.0
    %1887 = vmatpush1.msra.mxu0 0.0
    %1888 = vmatprep.subr.mxu0 0.0
    %1889 = vmatpush1.msra.mxu0 0.0
    %1890 = vmatprep.subr.mxu0 0.0
    %1891 = vmatpush1.msra.mxu0 0.0
    %1892 = vmatprep.subr.mxu0 0.0
    %1893 = vmatpush1.msra.mxu0 %v1101
    %1894 = vmatprep.subr.mxu0 0.0
    %1895 = vmatpush1.msra.mxu0 %v1100
    %1896 = vmatprep.subr.mxu0 0.0
    %1897 = vmatpush1.msra.mxu0 %v1099
    %1898 = vmatprep.subr.mxu0 0.0
    %1899 = vmatpush1.msra.mxu0 %v1098
    %1900 = vmatprep.subr.mxu0 0.0
    %1901 = vmatpush2.msra.mxu0 0.0
    %1902 = vmatprep.subr.mxu0 0.0
    %1903 = vmatpush2.msra.mxu0 0.0
    %1904 = vmatprep.subr.mxu0 0.0
    %1905 = vmatpush2.msra.mxu0 0.0
    %1906 = vmatprep.subr.mxu0 0.0
    %1907 = vmatpush2.msra.mxu0 0.0
    %1908 = vmatprep.subr.mxu0 0.0
    %1909 = vmatpush2.msra.mxu0 0.0
    %1910 = vmatprep.subr.mxu0 0.0
    %1911 = vmatpush2.msra.mxu0 0.0
    %1912 = vmatprep.subr.mxu0 0.0
    %1913 = vmatpush2.msra.mxu0 0.0
    %1914 = vmatprep.subr.mxu0 0.0
    %1915 = vmatpush2.msra.mxu0 0.0
    %1916 = vmatprep.subr.mxu0 0.0
    %1917 = vmatpush2.msra.mxu0 0.0
    %1918 = vmatprep.subr.mxu0 0.0
    %1919 = vmatpush2.msra.mxu0 0.0
    %1920 = vmatprep.subr.mxu0 0.0
    %1921 = vmatpush2.msra.mxu0 0.0
    %1922 = vmatprep.subr.mxu0 0.0
    %1923 = vmatpush2.msra.mxu0 0.0
    %1924 = vmatprep.subr.mxu0 0.0
    %1925 = vmatpush2.msra.mxu0 0.0
    %1926 = vmatprep.subr.mxu0 0.0
    %1927 = vmatpush2.msra.mxu0 0.0
    %1928 = vmatprep.subr.mxu0 0.0
    %1929 = vmatpush2.msra.mxu0 0.0
    %1930 = vmatprep.subr.mxu0 0.0
    %1931 = vmatpush2.msra.mxu0 0.0
    %1932 = vmatprep.mubr.f32.mxu0 0.0
    %1933 = vmatmul.mubr.f32.gmra.mxu0 %v1866
    %v1934 = vpop.f32.mrf.mxu0
    %v1935 = vadd.f32 0.0, %v1934
    %v1936 = vpop.f32.mrf.mxu0
    %1937 = vdwg.mxu0
    %v1938 = vadd.f32 %v1862, %v1935
    %v1939 = vtanh.pop %v1938
    %v1940 = vxor.u32 %v1938, 2147483648
    %v1941 = vmul.f32 %v1940, 1.442695
    %v1942 = vpow.pop %v1941
    %v1943 = vadd.f32 %v1942, 1.0
    %v1944 = vrcp.pop %v1943
    %v1945 = vmul.f32 1.0, %v1944
    %v1946 = vsel %vm83, %v1939, %v1945
    %v1947 = vmul.f32 %v1946, %v1855
    %1949 = vrot.lane.b32.xlu0 %v1946, 64
    %v1950 = vpop.permute.xlu0 %1949
    %v1952 = vmul.f32 %v1946, %v1950
    %1954 = vrot.lane.b32.xlu0 %v1952, 32
    %v1955 = vpop.permute.xlu0 %1954
    %v1957 = vadd.f32 %v1947, %v1955
    %v1958 = vtanh.pop %v1957
    %1960 = vrot.lane.b32.xlu0 %v1958, 64
    %v1961 = vpop.permute.xlu0 %1960
    %v1963 = vmul.f32 %v1946, %v1961
    %v1964 = vld [vmem:[%s986] sm:$0xff]
    %1966 = vrot.lane.b32.xlu0 %v1963, 32
    %v1967 = vpop.permute.xlu0 %1966
    %v1968 = vsel %vm107, %v1967, 0
    %1970 = vmatprep.subr.mxu0 0.0
    %1971 = vmatpush1.msra.mxu0 0.0
    %1972 = vmatprep.subr.mxu0 0.0
    %1973 = vmatpush1.msra.mxu0 0.0
    %1974 = vmatprep.subr.mxu0 0.0
    %1975 = vmatpush1.msra.mxu0 0.0
    %1976 = vmatprep.subr.mxu0 0.0
    %1977 = vmatpush1.msra.mxu0 0.0
    %1978 = vmatprep.subr.mxu0 0.0
    %1979 = vmatpush1.msra.mxu0 0.0
    %1980 = vmatprep.subr.mxu0 0.0
    %1981 = vmatpush1.msra.mxu0 0.0
    %1982 = vmatprep.subr.mxu0 0.0
    %1983 = vmatpush1.msra.mxu0 0.0
    %1984 = vmatprep.subr.mxu0 0.0
    %1985 = vmatpush1.msra.mxu0 0.0
    %1986 = vmatprep.subr.mxu0 0.0
    %1987 = vmatpush1.msra.mxu0 0.0
    %1988 = vmatprep.subr.mxu0 0.0
    %1989 = vmatpush1.msra.mxu0 0.0
    %1990 = vmatprep.subr.mxu0 0.0
    %1991 = vmatpush1.msra.mxu0 0.0
    %1992 = vmatprep.subr.mxu0 0.0
    %1993 = vmatpush1.msra.mxu0 0.0
    %1994 = vmatprep.subr.mxu0 0.0
    %1995 = vmatpush1.msra.mxu0 %v1101
    %1996 = vmatprep.subr.mxu0 0.0
    %1997 = vmatpush1.msra.mxu0 %v1100
    %1998 = vmatprep.subr.mxu0 0.0
    %1999 = vmatpush1.msra.mxu0 %v1099
    %2000 = vmatprep.subr.mxu0 0.0
    %2001 = vmatpush1.msra.mxu0 %v1098
    %2002 = vmatprep.subr.mxu0 0.0
    %2003 = vmatpush2.msra.mxu0 0.0
    %2004 = vmatprep.subr.mxu0 0.0
    %2005 = vmatpush2.msra.mxu0 0.0
    %2006 = vmatprep.subr.mxu0 0.0
    %2007 = vmatpush2.msra.mxu0 0.0
    %2008 = vmatprep.subr.mxu0 0.0
    %2009 = vmatpush2.msra.mxu0 0.0
    %2010 = vmatprep.subr.mxu0 0.0
    %2011 = vmatpush2.msra.mxu0 0.0
    %2012 = vmatprep.subr.mxu0 0.0
    %2013 = vmatpush2.msra.mxu0 0.0
    %2014 = vmatprep.subr.mxu0 0.0
    %2015 = vmatpush2.msra.mxu0 0.0
    %2016 = vmatprep.subr.mxu0 0.0
    %2017 = vmatpush2.msra.mxu0 0.0
    %2018 = vmatprep.subr.mxu0 0.0
    %2019 = vmatpush2.msra.mxu0 0.0
    %2020 = vmatprep.subr.mxu0 0.0
    %2021 = vmatpush2.msra.mxu0 0.0
    %2022 = vmatprep.subr.mxu0 0.0
    %2023 = vmatpush2.msra.mxu0 0.0
    %2024 = vmatprep.subr.mxu0 0.0
    %2025 = vmatpush2.msra.mxu0 0.0
    %2026 = vmatprep.subr.mxu0 0.0
    %2027 = vmatpush2.msra.mxu0 0.0
    %2028 = vmatprep.subr.mxu0 0.0
    %2029 = vmatpush2.msra.mxu0 0.0
    %2030 = vmatprep.subr.mxu0 0.0
    %2031 = vmatpush2.msra.mxu0 0.0
    %2032 = vmatprep.subr.mxu0 0.0
    %2033 = vmatpush2.msra.mxu0 0.0
    %2034 = vmatprep.mubr.f32.mxu0 0.0
    %2035 = vmatmul.mubr.f32.gmra.mxu0 %v1968
    %v2036 = vpop.f32.mrf.mxu0
    %v2037 = vadd.f32 0.0, %v2036
    %v2038 = vpop.f32.mrf.mxu0
    %2039 = vdwg.mxu0
    %v2040 = vadd.f32 %v1964, %v2037
    %v2041 = vtanh.pop %v2040
    %v2042 = vxor.u32 %v2040, 2147483648
    %v2043 = vmul.f32 %v2042, 1.442695
    %v2044 = vpow.pop %v2043
    %v2045 = vadd.f32 %v2044, 1.0
    %v2046 = vrcp.pop %v2045
    %v2047 = vmul.f32 1.0, %v2046
    %v2048 = vsel %vm83, %v2041, %v2047
    %v2049 = vmul.f32 %v2048, %v1957
    %2051 = vrot.lane.b32.xlu0 %v2048, 64
    %v2052 = vpop.permute.xlu0 %2051
    %v2054 = vmul.f32 %v2048, %v2052
    %2056 = vrot.lane.b32.xlu0 %v2054, 32
    %v2057 = vpop.permute.xlu0 %2056
    %v2059 = vadd.f32 %v2049, %v2057
    %v2060 = vtanh.pop %v2059
    %2062 = vrot.lane.b32.xlu0 %v2060, 64
    %v2063 = vpop.permute.xlu0 %2062
    %v2065 = vmul.f32 %v2048, %v2063
    %v2066 = vld [vmem:[#allocation10] sm:$0xff]
    %v2067 = vld [vmem:[#allocation10 + $0x8] sm:$0xff]
    %v2068 = vld [vmem:[#allocation10 + $0x10] sm:$0xff]
    %v2069 = vld [vmem:[#allocation10 + $0x18] sm:$0xff]
    %v2070 = vld [vmem:[%s5] sm:$0x1]
    %v2072 = vlaneseq
    %v2073 = vshrl.u32 %v2072, 7
    %v2074 = vsub.s32 0, %v2073
    %v2075 = vrot.slane %v2070, %v2074
    %2078 = vrot.lane.b32.xlu0 %v2065, 32
    %v2079 = vpop.permute.xlu0 %2078
    %v2080 = vsel %vm107, %v2079, 0
    %2082 = vmatprep.subr.mxu0 0.0
    %2083 = vmatpush1.msra.mxu0 0.0
    %2084 = vmatprep.subr.mxu0 0.0
    %2085 = vmatpush1.msra.mxu0 0.0
    %2086 = vmatprep.subr.mxu0 0.0
    %2087 = vmatpush1.msra.mxu0 0.0
    %2088 = vmatprep.subr.mxu0 0.0
    %2089 = vmatpush1.msra.mxu0 0.0
    %2090 = vmatprep.subr.mxu0 0.0
    %2091 = vmatpush1.msra.mxu0 0.0
    %2092 = vmatprep.subr.mxu0 0.0
    %2093 = vmatpush1.msra.mxu0 0.0
    %2094 = vmatprep.subr.mxu0 0.0
    %2095 = vmatpush1.msra.mxu0 0.0
    %2096 = vmatprep.subr.mxu0 0.0
    %2097 = vmatpush1.msra.mxu0 0.0
    %2098 = vmatprep.subr.mxu0 0.0
    %2099 = vmatpush1.msra.mxu0 0.0
    %2100 = vmatprep.subr.mxu0 0.0
    %2101 = vmatpush1.msra.mxu0 0.0
    %2102 = vmatprep.subr.mxu0 0.0
    %2103 = vmatpush1.msra.mxu0 0.0
    %2104 = vmatprep.subr.mxu0 0.0
    %2105 = vmatpush1.msra.mxu0 0.0
    %2106 = vmatprep.subr.mxu0 0.0
    %2107 = vmatpush1.msra.mxu0 %v2069
    %2108 = vmatprep.subr.mxu0 0.0
    %2109 = vmatpush1.msra.mxu0 %v2068
    %2110 = vmatprep.subr.mxu0 0.0
    %2111 = vmatpush1.msra.mxu0 %v2067
    %2112 = vmatprep.subr.mxu0 0.0
    %2113 = vmatpush1.msra.mxu0 %v2066
    %2114 = vmatprep.subr.mxu0 0.0
    %2115 = vmatpush2.msra.mxu0 0.0
    %2116 = vmatprep.subr.mxu0 0.0
    %2117 = vmatpush2.msra.mxu0 0.0
    %2118 = vmatprep.subr.mxu0 0.0
    %2119 = vmatpush2.msra.mxu0 0.0
    %2120 = vmatprep.subr.mxu0 0.0
    %2121 = vmatpush2.msra.mxu0 0.0
    %2122 = vmatprep.subr.mxu0 0.0
    %2123 = vmatpush2.msra.mxu0 0.0
    %2124 = vmatprep.subr.mxu0 0.0
    %2125 = vmatpush2.msra.mxu0 0.0
    %2126 = vmatprep.subr.mxu0 0.0
    %2127 = vmatpush2.msra.mxu0 0.0
    %2128 = vmatprep.subr.mxu0 0.0
    %2129 = vmatpush2.msra.mxu0 0.0
    %2130 = vmatprep.subr.mxu0 0.0
    %2131 = vmatpush2.msra.mxu0 0.0
    %2132 = vmatprep.subr.mxu0 0.0
    %2133 = vmatpush2.msra.mxu0 0.0
    %2134 = vmatprep.subr.mxu0 0.0
    %2135 = vmatpush2.msra.mxu0 0.0
    %2136 = vmatprep.subr.mxu0 0.0
    %2137 = vmatpush2.msra.mxu0 0.0
    %2138 = vmatprep.subr.mxu0 0.0
    %2139 = vmatpush2.msra.mxu0 0.0
    %2140 = vmatprep.subr.mxu0 0.0
    %2141 = vmatpush2.msra.mxu0 0.0
    %2142 = vmatprep.subr.mxu0 0.0
    %2143 = vmatpush2.msra.mxu0 0.0
    %2144 = vmatprep.subr.mxu0 0.0
    %2145 = vmatpush2.msra.mxu0 0.0
    %2146 = vmatprep.mubr.f32.mxu0 0.0
    %2147 = vmatmul.mubr.f32.gmra.mxu0 %v2080
    %v2148 = vpop.f32.mrf.mxu0
    %v2149 = vadd.f32 %v2075, %v2148
    %v2150 = vpop.f32.mrf.mxu0
    %2151 = vdwg.mxu0
    %v2152 = vmax.f32 %v2149, 0.0
    %2153 = vst [vmem:[#allocation12] sm:$0xff] %v2152
    // Predicated region
    $region42: #{tpu_custom_call.1} parent=1 // pred_check
      _
    $region43: #{tpu_custom_call.1} parent=1 // pred_check_branch
      %2155 = sbr.rel (0) target = $region45
    $region44: #{tpu_custom_call.1} parent=1 // pred_region
      %s2157 = ssub.s32 128, 128
      %2158 = vsyncadd [#allocation6], %s2157
      %s2160 = sshll.u32 [#allocation12], 4
      %s2161 = int_to_ptr.vmem [resolvable:$true] %s2160
      %2163 = dma.vmem_to_hbm [thread:$0]  %s2161, 128, %s6, [#allocation6]
    $region45: #{tpu_custom_call.1} parent=1 // pred_fallthru
      _
    // Predicated region
    $region46: #{tpu_custom_call.1} parent=1 // pred_check
      _
    $region47: #{tpu_custom_call.1} parent=1 // pred_check_branch
      %2165 = sbr.rel (0) target = $region49
    $region48: #{tpu_custom_call.1} parent=1 // pred_region
      %2166 = dma.done [#allocation6], 128
    $region49: #{tpu_custom_call.1} parent=1 // pred_fallthru
      _
    %2167 = vsyncpa [#allocation5], 1
    %2168 = vsyncpa [#allocation8], 1
    %2169 = vsyncpa [#allocation11], 1
    %2170 = vsyncpa [#allocation6], 1

</llo_original>
